<compile_context>
chip_gen: v7x
topology: tpu7x:2x2x1
jax: 0.10.0
libtpu: 0.0.40
codegen_flags: <defaults>
</compile_context>

<pallas_src>
import functools

import numpy as np

import jax
import jax.numpy as jnp
from jax.experimental import pallas as pl
from jax.experimental.pallas import tpu as pltpu


# ----------------------------------------------------------------------------
# Small helpers
# ----------------------------------------------------------------------------
def _round_up(x, m):
    return ((x + m - 1) // m) * m


def _pick_tb(bp):
    """Largest batch tile (multiple of 8, <=128) with >=2 grid steps if possible."""
    for t in (128, 64, 32, 16, 8):
        if bp % t == 0 and bp // t >= 2:
            return t
    return 8          # bp is always a multiple of 8; grid=(1,) only for tiny batches


def _banded_conv_mats(w_oihw, win, stride):
    """Banded matrices M[kh] of shape (Win*Cin, Wo*Cout) for a k=3, pad=1 conv.

    M[kh][w*Cin + ci, wo*Cout + co] = W[co, ci, kh, kw] with w = stride*wo + kw - 1
    (horizontal zero padding folded away: out-of-range taps are zero rows).
    """
    cout, cin = w_oihw.shape[0], w_oihw.shape[1]
    wo_n = (win + 2 - 3) // stride + 1
    sel = np.zeros((3, win, wo_n), np.float32)
    for kw in range(3):
        for wo in range(wo_n):
            wp = stride * wo + kw - 1
            if 0 <= wp < win:
                sel[kw, wp, wo] = 1.0
    sel = jnp.asarray(sel)
    w = jnp.transpose(w_oihw, (2, 3, 1, 0))            # (kh, kw, Cin, Cout)
    m = jnp.einsum("kpo,hkic->hpioc", sel, w)          # (3, Win, Cin, Wo, Cout)
    return m.reshape(3, win * cin, wo_n * cout)


def _even_odd_concat(m, cout):
    """Reorder banded output columns into [even wo || odd wo] for the 2x2 pool."""
    nkh, k, n = m.shape
    wo_n = n // cout
    m5 = m.reshape(nkh, k, wo_n // 2, 2, cout)
    even = m5[:, :, :, 0, :].reshape(nkh, k, (wo_n // 2) * cout)
    odd = m5[:, :, :, 1, :].reshape(nkh, k, (wo_n // 2) * cout)
    return jnp.concatenate([even, odd], axis=2)        # (3, K, 2 * (Wo/2)*Cout)


# ----------------------------------------------------------------------------
# Fully fused Pallas kernel (whole network, one batch tile per grid step)
# ----------------------------------------------------------------------------
def _ta_fused_kernel(x_ref, w1_ref, b1_ref, w2_ref, b2_ref, w3_ref, b3_ref,
                     wf_ref, bf_ref, o_ref, s2_ref, s3_ref, *, slope):
    """x_ref : (2*Ho1+1, TB, 128)  de-interleaved, vertically padded input rows
                rows [0 : Ho1+1]      = even padded rows 0,2,...,2*Ho1
                rows [Ho1+1 : 2Ho1+1] = odd  padded rows 1,3,...,2*Ho1-1
       wN_ref : (3, K, 2*Np)  banded conv weights, [even wo || odd wo] columns
       bN_ref : (1, Np)       bias tiled over pooled Wp
       wf_ref : (2, 64, 10)   conv4 (kh=1,2) folded with the dense layer
       bf_ref : (1, 10)
       o_ref  : (TB, 10)
       s2_ref : (Hp1+2, TB, Np1)  vertically padded scratch for layer-2 input
       s3_ref : (Hp2+2, TB, Np2)  vertically padded scratch for layer-3 input
    """
    tb = x_ref.shape[1]
    k1 = x_ref.shape[2]

    # ------------ layer 1: conv1 (3->16, k3 s2 p1) + bias + LReLU + pool ------
    ho1 = (x_ref.shape[0] - 1) // 2          # 16
    hp1 = ho1 // 2                           # 8
    n1 = w1_ref.shape[2]                     # 256
    np1 = n1 // 2                            # 128
    starts = (0, ho1 + 1, 1)                 # contiguous slice start per kh tap
    acc = jnp.zeros((ho1 * tb, n1), jnp.float32)
    for kh in range(3):
        rows = x_ref[pl.ds(starts[kh], ho1), :, :]                    # (Ho1,TB,K1)
        acc = acc + jnp.dot(rows.reshape(ho1 * tb, k1), w1_ref[kh],
                            preferred_element_type=jnp.float32)
    m = jnp.maximum(acc[:, :np1], acc[:, np1:])                       # horiz pool
    m = m.reshape(hp1, 2, tb, np1)
    m = jnp.maximum(m[:, 0], m[:, 1]) + b1_ref[...]                   # vert pool
    y1 = jnp.where(m >= 0.0, m, slope * m)                            # (8,TB,128)

    zrow = jnp.zeros((1, tb, np1), jnp.float32)
    s2_ref[pl.ds(0, 1), :, :] = zrow
    s2_ref[pl.ds(hp1 + 1, 1), :, :] = zrow
    s2_ref[pl.ds(1, hp1), :, :] = y1

    # ------------ layer 2: conv2 (16->32, k3 s1 p1) + bias + LReLU + pool -----
    hin2 = hp1                               # 8
    hp2 = hin2 // 2                          # 4
    k2 = np1                                 # 128
    n2 = w2_ref.shape[2]                     # 256
    np2 = n2 // 2                            # 128
    acc = jnp.zeros((hin2 * tb, n2), jnp.float32)
    for kh in range(3):
        rows = s2_ref[pl.ds(kh, hin2), :, :]                          # (8,TB,128)
        acc = acc + jnp.dot(rows.reshape(hin2 * tb, k2), w2_ref[kh],
                            preferred_element_type=jnp.float32)
    m = jnp.maximum(acc[:, :np2], acc[:, np2:]).reshape(hp2, 2, tb, np2)
    m = jnp.maximum(m[:, 0], m[:, 1]) + b2_ref[...]
    y2 = jnp.where(m >= 0.0, m, slope * m)                            # (4,TB,128)

    zrow = jnp.zeros((1, tb, np2), jnp.float32)
    s3_ref[pl.ds(0, 1), :, :] = zrow
    s3_ref[pl.ds(hp2 + 1, 1), :, :] = zrow
    s3_ref[pl.ds(1, hp2), :, :] = y2

    # ------------ layer 3: conv3 (32->32, k3 s1 p1) + bias + LReLU + pool -----
    hin3 = hp2                               # 4
    hp3 = hin3 // 2                          # 2
    k3 = np2                                 # 128
    n3 = w3_ref.shape[2]                     # 128
    np3 = n3 // 2                            # 64
    acc = jnp.zeros((hin3 * tb, n3), jnp.float32)
    for kh in range(3):
        rows = s3_ref[pl.ds(kh, hin3), :, :]                          # (4,TB,128)
        acc = acc + jnp.dot(rows.reshape(hin3 * tb, k3), w3_ref[kh],
                            preferred_element_type=jnp.float32)
    m = jnp.maximum(acc[:, :np3], acc[:, np3:]).reshape(hp3, 2, tb, np3)
    m = jnp.maximum(m[:, 0], m[:, 1]) + b3_ref[...]
    y3 = jnp.where(m >= 0.0, m, slope * m)                            # (2,TB,64)

    # ---- layer 4: conv4 (32->32, k3 s2 p1, 2x2 -> 1x1) pre-folded with dense --
    # kh=0 tap hits the all-zero padded row and was dropped in the wrapper.
    out = (jnp.dot(y3[0], wf_ref[0], preferred_element_type=jnp.float32)
           + jnp.dot(y3[1], wf_ref[1], preferred_element_type=jnp.float32)
           + bf_ref[...])
    o_ref[...] = out.astype(o_ref.dtype)


# ----------------------------------------------------------------------------
# Parameter preparation (runs ONCE, outside the per-call forward)
# ----------------------------------------------------------------------------
def prepare_kernel_weights(params):
    # conv1: pad Cin 3 -> 4 so K1 = 32*4 = 128 (lane/MXU dense).
    w1 = jnp.pad(params["conv1_w"], ((0, 0), (0, 1), (0, 0), (0, 0)))
    w1cat = _even_odd_concat(_banded_conv_mats(w1, win=32, stride=2), 16)  # (3,128,256)
    b1 = jnp.tile(params["conv1_b"], 8)[None, :]                           # (1,128)

    w2cat = _even_odd_concat(
        _banded_conv_mats(params["conv2_w"], win=8, stride=1), 32)         # (3,128,256)
    b2 = jnp.tile(params["conv2_b"], 4)[None, :]                           # (1,128)

    w3cat = _even_odd_concat(
        _banded_conv_mats(params["conv3_w"], win=4, stride=1), 32)         # (3,128,128)
    b3 = jnp.tile(params["conv3_b"], 2)[None, :]                           # (1,64)

    # conv4 (2x2 -> 1x1, stride 2) folded with Linear(32 -> 10); drop kh=0 tap.
    m4 = _banded_conv_mats(params["conv4_w"], win=2, stride=2)             # (3,64,32)
    wd = params["dense_w"].T                                               # (32,10)
    wf = jnp.einsum("hkc,cn->hkn", m4[1:], wd)                             # (2,64,10)
    bf = (params["conv4_b"] @ wd + params["dense_b"])[None, :]             # (1,10)

    return {"w1": w1cat, "b1": b1, "w2": w2cat, "b2": b2,
            "w3": w3cat, "b3": b3, "wf": wf, "bf": bf}


# ----------------------------------------------------------------------------
# Forward pass (single fused pallas_call)
# ----------------------------------------------------------------------------
def ta_forward(prepped, x_nchw):
    b, c, h, w = x_nchw.shape
    assert (c, h, w) == (3, 32, 32), "TA's Linear(1*1*32,10) requires 3x32x32 input"
    cpad = 4
    x = jnp.pad(x_nchw, ((0, 0), (0, cpad - c), (0, 0), (0, 0)))
    # NCHW -> (H, B, W*C): batch on the sublane axis, (w, c) packed on lanes.
    x = jnp.transpose(x, (2, 0, 3, 1)).reshape(h, b, w * cpad)
    bp = max(_round_up(b, 8), 8)
    if bp != b:
        x = jnp.pad(x, ((0, 0), (0, bp - b), (0, 0)))

    # Vertical zero-pad + even/odd row de-interleave for the stride-2 conv1:
    # xp rows [0:17]  = padded rows 0,2,...,32 ; rows [17:33] = padded rows 1,...,31.
    zero = jnp.zeros((1, bp, w * cpad), x.dtype)
    xp = jnp.concatenate([zero, x[1::2], x[0::2]], axis=0)           # (33, Bp, 128)

    tb = _pick_tb(bp)
    hp1, np1 = 8, 128
    hp2, np2 = 4, 128
    nout = prepped["wf"].shape[2]

    out = pl.pallas_call(
        functools.partial(_ta_fused_kernel, slope=0.2),
        out_shape=jax.ShapeDtypeStruct((bp, nout), jnp.float32),
        grid=(bp // tb,),
        in_specs=[
            pl.BlockSpec((xp.shape[0], tb, xp.shape[2]), lambda i: (0, i, 0)),
            pl.BlockSpec(prepped["w1"].shape, lambda i: (0, 0, 0)),   # weights resident
            pl.BlockSpec(prepped["b1"].shape, lambda i: (0, 0)),
            pl.BlockSpec(prepped["w2"].shape, lambda i: (0, 0, 0)),
            pl.BlockSpec(prepped["b2"].shape, lambda i: (0, 0)),
            pl.BlockSpec(prepped["w3"].shape, lambda i: (0, 0, 0)),
            pl.BlockSpec(prepped["b3"].shape, lambda i: (0, 0)),
            pl.BlockSpec(prepped["wf"].shape, lambda i: (0, 0, 0)),
            pl.BlockSpec(prepped["bf"].shape, lambda i: (0, 0)),
        ],
        out_specs=pl.BlockSpec((tb, nout), lambda i: (i, 0)),
        scratch_shapes=[
            pltpu.VMEM((hp1 + 2, tb, np1), jnp.float32),   # padded layer-2 input
            pltpu.VMEM((hp2 + 2, tb, np2), jnp.float32),   # padded layer-3 input
        ],
        compiler_params=pltpu.CompilerParams(
            dimension_semantics=("parallel",),
            vmem_limit_bytes=32 * 1024 * 1024,
        ),
    )(xp, prepped["w1"], prepped["b1"], prepped["w2"], prepped["b2"],
      prepped["w3"], prepped["b3"], prepped["wf"], prepped["bf"])
    return out[:b]


# ----------------------------------------------------------------------------
# Parameters
# ----------------------------------------------------------------------------
def init_params(key):
    ks = jax.random.split(key, 10)
    s = 0.1
    return {
        "conv1_w": jax.random.normal(ks[0], (16, 3, 3, 3), jnp.float32) * s,
        "conv1_b": jax.random.normal(ks[1], (16,), jnp.float32) * s,
        "conv2_w": jax.random.normal(ks[2], (32, 16, 3, 3), jnp.float32) * s,
        "conv2_b": jax.random.normal(ks[3], (32,), jnp.float32) * s,
        "conv3_w": jax.random.normal(ks[4], (32, 32, 3, 3), jnp.float32) * s,
        "conv3_b": jax.random.normal(ks[5], (32,), jnp.float32) * s,
        "conv4_w": jax.random.normal(ks[6], (32, 32, 3, 3), jnp.float32) * s,
        "conv4_b": jax.random.normal(ks[7], (32,), jnp.float32) * s,
        "dense_w": jax.random.normal(ks[8], (10, 32), jnp.float32) * s,  # torch (out,in)
        "dense_b": jax.random.normal(ks[9], (10,), jnp.float32) * s,
    }


# ----------------------------------------------------------------------------
# Pure-JAX reference (for verification)
# ----------------------------------------------------------------------------
def _ref_conv(x_nhwc, w_oihw, b, stride, leaky):
    w_hwio = jnp.transpose(w_oihw, (2, 3, 1, 0))
    y = jax.lax.conv_general_dilated(
        x_nhwc, w_hwio, window_strides=(stride, stride), padding=((1, 1), (1, 1)),
        dimension_numbers=("NHWC", "HWIO", "NHWC"))
    y = y + b.reshape(1, 1, 1, -1)
    if leaky:
        y = jnp.where(y >= 0.0, y, 0.2 * y)
    return y


def _ref_pool(x):
    return jnp.maximum(
        jnp.maximum(x[:, 0::2, 0::2, :], x[:, 0::2, 1::2, :]),
        jnp.maximum(x[:, 1::2, 0::2, :], x[:, 1::2, 1::2, :]))


def ta_forward_ref(params, x_nchw):
    x = jnp.transpose(x_nchw, (0, 2, 3, 1))
    x = _ref_pool(_ref_conv(x, params["conv1_w"], params["conv1_b"], 2, True))
    x = _ref_pool(_ref_conv(x, params["conv2_w"], params["conv2_b"], 1, True))
    x = _ref_pool(_ref_conv(x, params["conv3_w"], params["conv3_b"], 1, True))
    x = _ref_conv(x, params["conv4_w"], params["conv4_b"], 2, False)
    feat = x.reshape(x.shape[0], -1)
    return feat @ params["dense_w"].T + params["dense_b"]


# ----------------------------------------------------------------------------
if __name__ == "__main__":
    key = jax.random.PRNGKey(0)
    pkey, xkey = jax.random.split(key)
    params = init_params(pkey)

    # The dense layer (1*1*32 -> 10) forces a 3x32x32 input; batch = 2.
    x = jax.random.normal(xkey, (2, 3, 32, 32), jnp.float32)

    prepped = prepare_kernel_weights(params)          # built once, outside the jit
    fwd = jax.jit(ta_forward)
    out = jax.block_until_ready(fwd(prepped, x))
    assert out.shape == (2, 10), out.shape

    ref = jax.block_until_ready(ta_forward_ref(params, x))
    assert jnp.allclose(out, ref, rtol=1e-3, atol=1e-3), (
        float(jnp.max(jnp.abs(out - ref))))

    print("KERNEL_OK")
</pallas_src>

<mosaic_0001>
module attributes {stable_mosaic.version = 11 : i64} {
  func.func @_ta_fused_kernel(%arg0: i32, %arg1: memref<33x8x128xf32, #tpu.memory_space<vmem>>, %arg2: memref<3x128x256xf32, #tpu.memory_space<vmem>>, %arg3: memref<1x128xf32, #tpu.memory_space<vmem>>, %arg4: memref<3x128x256xf32, #tpu.memory_space<vmem>>, %arg5: memref<1x128xf32, #tpu.memory_space<vmem>>, %arg6: memref<3x128x128xf32, #tpu.memory_space<vmem>>, %arg7: memref<1x64xf32, #tpu.memory_space<vmem>>, %arg8: memref<2x64x10xf32, #tpu.memory_space<vmem>>, %arg9: memref<1x10xf32, #tpu.memory_space<vmem>>, %arg10: memref<8x10xf32, #tpu.memory_space<vmem>>, %arg11: memref<10x8x128xf32, #tpu.memory_space<vmem>>, %arg12: memref<6x8x128xf32, #tpu.memory_space<vmem>>) attributes {dimension_semantics = [#tpu.dimension_semantics<parallel>], iteration_bounds = array<i64: 1>, scalar_prefetch = 0 : i64, scratch_operands = 2 : i64, tpu.core_type = #tpu.core_type<tc>, window_params = [{transform_indices = @transform_0, window_bounds = array<i64: 33, 8, 128>}, {pipeline_mode = #tpu.pipeline_mode<synchronous>, transform_indices = @transform_1, window_bounds = array<i64: 3, 128, 256>}, {pipeline_mode = #tpu.pipeline_mode<synchronous>, transform_indices = @transform_2, window_bounds = array<i64: 1, 128>}, {pipeline_mode = #tpu.pipeline_mode<synchronous>, transform_indices = @transform_3, window_bounds = array<i64: 3, 128, 256>}, {pipeline_mode = #tpu.pipeline_mode<synchronous>, transform_indices = @transform_4, window_bounds = array<i64: 1, 128>}, {pipeline_mode = #tpu.pipeline_mode<synchronous>, transform_indices = @transform_5, window_bounds = array<i64: 3, 128, 128>}, {pipeline_mode = #tpu.pipeline_mode<synchronous>, transform_indices = @transform_6, window_bounds = array<i64: 1, 64>}, {pipeline_mode = #tpu.pipeline_mode<synchronous>, transform_indices = @transform_7, window_bounds = array<i64: 2, 64, 10>}, {pipeline_mode = #tpu.pipeline_mode<synchronous>, transform_indices = @transform_8, window_bounds = array<i64: 1, 10>}, {transform_indices = @transform_9, window_bounds = array<i64: 8, 10>}]} {
    %cst = arith.constant 0.000000e+00 : f32
    %0 = vector.broadcast %cst : f32 to vector<128x256xf32>
    %c0 = arith.constant 0 : index
    %c0_0 = arith.constant 0 : index
    %c0_1 = arith.constant 0 : index
    %1 = vector.load %arg1[%c0, %c0_0, %c0_1] : memref<33x8x128xf32, #tpu.memory_space<vmem>>, vector<16x8x128xf32>
    %2 = vector.shape_cast %1 : vector<16x8x128xf32> to vector<128x128xf32>
    %c0_2 = arith.constant 0 : index
    %c0_3 = arith.constant 0 : index
    %c0_4 = arith.constant 0 : index
    %3 = vector.load %arg2[%c0_2, %c0_3, %c0_4] : memref<3x128x256xf32, #tpu.memory_space<vmem>>, vector<1x128x256xf32>
    %4 = vector.shape_cast %3 : vector<1x128x256xf32> to vector<128x256xf32>
    %cst_5 = arith.constant dense<0.000000e+00> : vector<128x256xf32>
    %5 = tpu.matmul %2, %4, %cst_5 {dimension_numbers = #tpu.dot_dimension_numbers<[1], [0], [0], [1], [0, 0, 1, 1], [], []>} : vector<128x128xf32>, vector<128x256xf32>, vector<128x256xf32> -> vector<128x256xf32>
    %6 = arith.addf %0, %5 : vector<128x256xf32>
    %c17 = arith.constant 17 : index
    %c0_6 = arith.constant 0 : index
    %c0_7 = arith.constant 0 : index
    %7 = vector.load %arg1[%c17, %c0_6, %c0_7] : memref<33x8x128xf32, #tpu.memory_space<vmem>>, vector<16x8x128xf32>
    %8 = vector.shape_cast %7 : vector<16x8x128xf32> to vector<128x128xf32>
    %c1 = arith.constant 1 : index
    %c0_8 = arith.constant 0 : index
    %c0_9 = arith.constant 0 : index
    %9 = vector.load %arg2[%c1, %c0_8, %c0_9] : memref<3x128x256xf32, #tpu.memory_space<vmem>>, vector<1x128x256xf32>
    %10 = vector.shape_cast %9 : vector<1x128x256xf32> to vector<128x256xf32>
    %cst_10 = arith.constant dense<0.000000e+00> : vector<128x256xf32>
    %11 = tpu.matmul %8, %10, %cst_10 {dimension_numbers = #tpu.dot_dimension_numbers<[1], [0], [0], [1], [0, 0, 1, 1], [], []>} : vector<128x128xf32>, vector<128x256xf32>, vector<128x256xf32> -> vector<128x256xf32>
    %12 = arith.addf %6, %11 : vector<128x256xf32>
    %c1_11 = arith.constant 1 : index
    %c0_12 = arith.constant 0 : index
    %c0_13 = arith.constant 0 : index
    %13 = vector.load %arg1[%c1_11, %c0_12, %c0_13] : memref<33x8x128xf32, #tpu.memory_space<vmem>>, vector<16x8x128xf32>
    %14 = vector.shape_cast %13 : vector<16x8x128xf32> to vector<128x128xf32>
    %c2 = arith.constant 2 : index
    %c0_14 = arith.constant 0 : index
    %c0_15 = arith.constant 0 : index
    %15 = vector.load %arg2[%c2, %c0_14, %c0_15] : memref<3x128x256xf32, #tpu.memory_space<vmem>>, vector<1x128x256xf32>
    %16 = vector.shape_cast %15 : vector<1x128x256xf32> to vector<128x256xf32>
    %cst_16 = arith.constant dense<0.000000e+00> : vector<128x256xf32>
    %17 = tpu.matmul %14, %16, %cst_16 {dimension_numbers = #tpu.dot_dimension_numbers<[1], [0], [0], [1], [0, 0, 1, 1], [], []>} : vector<128x128xf32>, vector<128x256xf32>, vector<128x256xf32> -> vector<128x256xf32>
    %18 = arith.addf %12, %17 : vector<128x256xf32>
    %19 = vector.extract_strided_slice %18 {offsets = [0, 0], sizes = [128, 128], strides = [1, 1]} : vector<128x256xf32> to vector<128x128xf32>
    %20 = vector.extract_strided_slice %18 {offsets = [0, 128], sizes = [128, 128], strides = [1, 1]} : vector<128x256xf32> to vector<128x128xf32>
    %21 = arith.maximumf %19, %20 : vector<128x128xf32>
    %22 = vector.shape_cast %21 : vector<128x128xf32> to vector<8x2x8x128xf32>
    %23 = vector.extract_strided_slice %22 {offsets = [0, 0, 0, 0], sizes = [8, 1, 8, 128], strides = [1, 1, 1, 1]} : vector<8x2x8x128xf32> to vector<8x1x8x128xf32>
    %24 = vector.shape_cast %23 : vector<8x1x8x128xf32> to vector<8x8x128xf32>
    %25 = vector.extract_strided_slice %22 {offsets = [0, 1, 0, 0], sizes = [8, 1, 8, 128], strides = [1, 1, 1, 1]} : vector<8x2x8x128xf32> to vector<8x1x8x128xf32>
    %26 = vector.shape_cast %25 : vector<8x1x8x128xf32> to vector<8x8x128xf32>
    %27 = arith.maximumf %24, %26 : vector<8x8x128xf32>
    %c0_17 = arith.constant 0 : index
    %c0_18 = arith.constant 0 : index
    %28 = vector.load %arg3[%c0_17, %c0_18] : memref<1x128xf32, #tpu.memory_space<vmem>>, vector<1x128xf32>
    %29 = vector.shape_cast %28 : vector<1x128xf32> to vector<1x1x128xf32>
    %30 = vector.broadcast %29 : vector<1x1x128xf32> to vector<8x8x128xf32>
    %31 = arith.addf %27, %30 : vector<8x8x128xf32>
    %cst_19 = arith.constant 0.000000e+00 : f32
    %32 = vector.broadcast %cst_19 : f32 to vector<8x8x128xf32>
    %33 = arith.cmpf oge, %31, %32 : vector<8x8x128xf32>
    %cst_20 = arith.constant 2.000000e-01 : f32
    %34 = vector.broadcast %cst_20 : f32 to vector<8x8x128xf32>
    %35 = arith.mulf %34, %31 : vector<8x8x128xf32>
    %36 = arith.select %33, %31, %35 : vector<8x8x128xi1>, vector<8x8x128xf32>
    %cst_21 = arith.constant 0.000000e+00 : f32
    %37 = vector.broadcast %cst_21 : f32 to vector<1x8x128xf32>
    %c0_22 = arith.constant 0 : index
    %c0_23 = arith.constant 0 : index
    %c0_24 = arith.constant 0 : index
    %38 = vector.load %arg11[%c0_22, %c0_23, %c0_24] : memref<10x8x128xf32, #tpu.memory_space<vmem>>, vector<1x8x128xf32>
    tpu.vector_store %arg11[%c0_22, %c0_23, %c0_24], %37 {strides = array<i32>} : memref<10x8x128xf32, #tpu.memory_space<vmem>>, vector<1x8x128xf32>,
    %c9 = arith.constant 9 : index
    %c0_25 = arith.constant 0 : index
    %c0_26 = arith.constant 0 : index
    %39 = vector.load %arg11[%c9, %c0_25, %c0_26] : memref<10x8x128xf32, #tpu.memory_space<vmem>>, vector<1x8x128xf32>
    tpu.vector_store %arg11[%c9, %c0_25, %c0_26], %37 {strides = array<i32>} : memref<10x8x128xf32, #tpu.memory_space<vmem>>, vector<1x8x128xf32>,
    %c1_27 = arith.constant 1 : index
    %c0_28 = arith.constant 0 : index
    %c0_29 = arith.constant 0 : index
    %40 = vector.load %arg11[%c1_27, %c0_28, %c0_29] : memref<10x8x128xf32, #tpu.memory_space<vmem>>, vector<8x8x128xf32>
    tpu.vector_store %arg11[%c1_27, %c0_28, %c0_29], %36 {strides = array<i32>} : memref<10x8x128xf32, #tpu.memory_space<vmem>>, vector<8x8x128xf32>,
    %cst_30 = arith.constant 0.000000e+00 : f32
    %41 = vector.broadcast %cst_30 : f32 to vector<64x256xf32>
    %c0_31 = arith.constant 0 : index
    %c0_32 = arith.constant 0 : index
    %c0_33 = arith.constant 0 : index
    %42 = vector.load %arg11[%c0_31, %c0_32, %c0_33] : memref<10x8x128xf32, #tpu.memory_space<vmem>>, vector<8x8x128xf32>
    %43 = vector.shape_cast %42 : vector<8x8x128xf32> to vector<64x128xf32>
    %c0_34 = arith.constant 0 : index
    %c0_35 = arith.constant 0 : index
    %c0_36 = arith.constant 0 : index
    %44 = vector.load %arg4[%c0_34, %c0_35, %c0_36] : memref<3x128x256xf32, #tpu.memory_space<vmem>>, vector<1x128x256xf32>
    %45 = vector.shape_cast %44 : vector<1x128x256xf32> to vector<128x256xf32>
    %cst_37 = arith.constant dense<0.000000e+00> : vector<64x256xf32>
    %46 = tpu.matmul %43, %45, %cst_37 {dimension_numbers = #tpu.dot_dimension_numbers<[1], [0], [0], [1], [0, 0, 1, 1], [], []>} : vector<64x128xf32>, vector<128x256xf32>, vector<64x256xf32> -> vector<64x256xf32>
    %47 = arith.addf %41, %46 : vector<64x256xf32>
    %c1_38 = arith.constant 1 : index
    %c0_39 = arith.constant 0 : index
    %c0_40 = arith.constant 0 : index
    %48 = vector.load %arg11[%c1_38, %c0_39, %c0_40] : memref<10x8x128xf32, #tpu.memory_space<vmem>>, vector<8x8x128xf32>
    %49 = vector.shape_cast %48 : vector<8x8x128xf32> to vector<64x128xf32>
    %c1_41 = arith.constant 1 : index
    %c0_42 = arith.constant 0 : index
    %c0_43 = arith.constant 0 : index
    %50 = vector.load %arg4[%c1_41, %c0_42, %c0_43] : memref<3x128x256xf32, #tpu.memory_space<vmem>>, vector<1x128x256xf32>
    %51 = vector.shape_cast %50 : vector<1x128x256xf32> to vector<128x256xf32>
    %cst_44 = arith.constant dense<0.000000e+00> : vector<64x256xf32>
    %52 = tpu.matmul %49, %51, %cst_44 {dimension_numbers = #tpu.dot_dimension_numbers<[1], [0], [0], [1], [0, 0, 1, 1], [], []>} : vector<64x128xf32>, vector<128x256xf32>, vector<64x256xf32> -> vector<64x256xf32>
    %53 = arith.addf %47, %52 : vector<64x256xf32>
    %c2_45 = arith.constant 2 : index
    %c0_46 = arith.constant 0 : index
    %c0_47 = arith.constant 0 : index
    %54 = vector.load %arg11[%c2_45, %c0_46, %c0_47] : memref<10x8x128xf32, #tpu.memory_space<vmem>>, vector<8x8x128xf32>
    %55 = vector.shape_cast %54 : vector<8x8x128xf32> to vector<64x128xf32>
    %c2_48 = arith.constant 2 : index
    %c0_49 = arith.constant 0 : index
    %c0_50 = arith.constant 0 : index
    %56 = vector.load %arg4[%c2_48, %c0_49, %c0_50] : memref<3x128x256xf32, #tpu.memory_space<vmem>>, vector<1x128x256xf32>
    %57 = vector.shape_cast %56 : vector<1x128x256xf32> to vector<128x256xf32>
    %cst_51 = arith.constant dense<0.000000e+00> : vector<64x256xf32>
    %58 = tpu.matmul %55, %57, %cst_51 {dimension_numbers = #tpu.dot_dimension_numbers<[1], [0], [0], [1], [0, 0, 1, 1], [], []>} : vector<64x128xf32>, vector<128x256xf32>, vector<64x256xf32> -> vector<64x256xf32>
    %59 = arith.addf %53, %58 : vector<64x256xf32>
    %60 = vector.extract_strided_slice %59 {offsets = [0, 0], sizes = [64, 128], strides = [1, 1]} : vector<64x256xf32> to vector<64x128xf32>
    %61 = vector.extract_strided_slice %59 {offsets = [0, 128], sizes = [64, 128], strides = [1, 1]} : vector<64x256xf32> to vector<64x128xf32>
    %62 = arith.maximumf %60, %61 : vector<64x128xf32>
    %63 = vector.shape_cast %62 : vector<64x128xf32> to vector<4x2x8x128xf32>
    %64 = vector.extract_strided_slice %63 {offsets = [0, 0, 0, 0], sizes = [4, 1, 8, 128], strides = [1, 1, 1, 1]} : vector<4x2x8x128xf32> to vector<4x1x8x128xf32>
    %65 = vector.shape_cast %64 : vector<4x1x8x128xf32> to vector<4x8x128xf32>
    %66 = vector.extract_strided_slice %63 {offsets = [0, 1, 0, 0], sizes = [4, 1, 8, 128], strides = [1, 1, 1, 1]} : vector<4x2x8x128xf32> to vector<4x1x8x128xf32>
    %67 = vector.shape_cast %66 : vector<4x1x8x128xf32> to vector<4x8x128xf32>
    %68 = arith.maximumf %65, %67 : vector<4x8x128xf32>
    %c0_52 = arith.constant 0 : index
    %c0_53 = arith.constant 0 : index
    %69 = vector.load %arg5[%c0_52, %c0_53] : memref<1x128xf32, #tpu.memory_space<vmem>>, vector<1x128xf32>
    %70 = vector.shape_cast %69 : vector<1x128xf32> to vector<1x1x128xf32>
    %71 = vector.broadcast %70 : vector<1x1x128xf32> to vector<4x8x128xf32>
    %72 = arith.addf %68, %71 : vector<4x8x128xf32>
    %cst_54 = arith.constant 0.000000e+00 : f32
    %73 = vector.broadcast %cst_54 : f32 to vector<4x8x128xf32>
    %74 = arith.cmpf oge, %72, %73 : vector<4x8x128xf32>
    %cst_55 = arith.constant 2.000000e-01 : f32
    %75 = vector.broadcast %cst_55 : f32 to vector<4x8x128xf32>
    %76 = arith.mulf %75, %72 : vector<4x8x128xf32>
    %77 = arith.select %74, %72, %76 : vector<4x8x128xi1>, vector<4x8x128xf32>
    %cst_56 = arith.constant 0.000000e+00 : f32
    %78 = vector.broadcast %cst_56 : f32 to vector<1x8x128xf32>
    %c0_57 = arith.constant 0 : index
    %c0_58 = arith.constant 0 : index
    %c0_59 = arith.constant 0 : index
    %79 = vector.load %arg12[%c0_57, %c0_58, %c0_59] : memref<6x8x128xf32, #tpu.memory_space<vmem>>, vector<1x8x128xf32>
    tpu.vector_store %arg12[%c0_57, %c0_58, %c0_59], %78 {strides = array<i32>} : memref<6x8x128xf32, #tpu.memory_space<vmem>>, vector<1x8x128xf32>,
    %c5 = arith.constant 5 : index
    %c0_60 = arith.constant 0 : index
    %c0_61 = arith.constant 0 : index
    %80 = vector.load %arg12[%c5, %c0_60, %c0_61] : memref<6x8x128xf32, #tpu.memory_space<vmem>>, vector<1x8x128xf32>
    tpu.vector_store %arg12[%c5, %c0_60, %c0_61], %78 {strides = array<i32>} : memref<6x8x128xf32, #tpu.memory_space<vmem>>, vector<1x8x128xf32>,
    %c1_62 = arith.constant 1 : index
    %c0_63 = arith.constant 0 : index
    %c0_64 = arith.constant 0 : index
    %81 = vector.load %arg12[%c1_62, %c0_63, %c0_64] : memref<6x8x128xf32, #tpu.memory_space<vmem>>, vector<4x8x128xf32>
    tpu.vector_store %arg12[%c1_62, %c0_63, %c0_64], %77 {strides = array<i32>} : memref<6x8x128xf32, #tpu.memory_space<vmem>>, vector<4x8x128xf32>,
    %cst_65 = arith.constant 0.000000e+00 : f32
    %82 = vector.broadcast %cst_65 : f32 to vector<32x128xf32>
    %c0_66 = arith.constant 0 : index
    %c0_67 = arith.constant 0 : index
    %c0_68 = arith.constant 0 : index
    %83 = vector.load %arg12[%c0_66, %c0_67, %c0_68] : memref<6x8x128xf32, #tpu.memory_space<vmem>>, vector<4x8x128xf32>
    %84 = vector.shape_cast %83 : vector<4x8x128xf32> to vector<32x128xf32>
    %c0_69 = arith.constant 0 : index
    %c0_70 = arith.constant 0 : index
    %c0_71 = arith.constant 0 : index
    %85 = vector.load %arg6[%c0_69, %c0_70, %c0_71] : memref<3x128x128xf32, #tpu.memory_space<vmem>>, vector<1x128x128xf32>
    %86 = vector.shape_cast %85 : vector<1x128x128xf32> to vector<128x128xf32>
    %cst_72 = arith.constant dense<0.000000e+00> : vector<32x128xf32>
    %87 = tpu.matmul %84, %86, %cst_72 {dimension_numbers = #tpu.dot_dimension_numbers<[1], [0], [0], [1], [0, 0, 1, 1], [], []>} : vector<32x128xf32>, vector<128x128xf32>, vector<32x128xf32> -> vector<32x128xf32>
    %88 = arith.addf %82, %87 : vector<32x128xf32>
    %c1_73 = arith.constant 1 : index
    %c0_74 = arith.constant 0 : index
    %c0_75 = arith.constant 0 : index
    %89 = vector.load %arg12[%c1_73, %c0_74, %c0_75] : memref<6x8x128xf32, #tpu.memory_space<vmem>>, vector<4x8x128xf32>
    %90 = vector.shape_cast %89 : vector<4x8x128xf32> to vector<32x128xf32>
    %c1_76 = arith.constant 1 : index
    %c0_77 = arith.constant 0 : index
    %c0_78 = arith.constant 0 : index
    %91 = vector.load %arg6[%c1_76, %c0_77, %c0_78] : memref<3x128x128xf32, #tpu.memory_space<vmem>>, vector<1x128x128xf32>
    %92 = vector.shape_cast %91 : vector<1x128x128xf32> to vector<128x128xf32>
    %cst_79 = arith.constant dense<0.000000e+00> : vector<32x128xf32>
    %93 = tpu.matmul %90, %92, %cst_79 {dimension_numbers = #tpu.dot_dimension_numbers<[1], [0], [0], [1], [0, 0, 1, 1], [], []>} : vector<32x128xf32>, vector<128x128xf32>, vector<32x128xf32> -> vector<32x128xf32>
    %94 = arith.addf %88, %93 : vector<32x128xf32>
    %c2_80 = arith.constant 2 : index
    %c0_81 = arith.constant 0 : index
    %c0_82 = arith.constant 0 : index
    %95 = vector.load %arg12[%c2_80, %c0_81, %c0_82] : memref<6x8x128xf32, #tpu.memory_space<vmem>>, vector<4x8x128xf32>
    %96 = vector.shape_cast %95 : vector<4x8x128xf32> to vector<32x128xf32>
    %c2_83 = arith.constant 2 : index
    %c0_84 = arith.constant 0 : index
    %c0_85 = arith.constant 0 : index
    %97 = vector.load %arg6[%c2_83, %c0_84, %c0_85] : memref<3x128x128xf32, #tpu.memory_space<vmem>>, vector<1x128x128xf32>
    %98 = vector.shape_cast %97 : vector<1x128x128xf32> to vector<128x128xf32>
    %cst_86 = arith.constant dense<0.000000e+00> : vector<32x128xf32>
    %99 = tpu.matmul %96, %98, %cst_86 {dimension_numbers = #tpu.dot_dimension_numbers<[1], [0], [0], [1], [0, 0, 1, 1], [], []>} : vector<32x128xf32>, vector<128x128xf32>, vector<32x128xf32> -> vector<32x128xf32>
    %100 = arith.addf %94, %99 : vector<32x128xf32>
    %101 = vector.extract_strided_slice %100 {offsets = [0, 0], sizes = [32, 64], strides = [1, 1]} : vector<32x128xf32> to vector<32x64xf32>
    %102 = vector.extract_strided_slice %100 {offsets = [0, 64], sizes = [32, 64], strides = [1, 1]} : vector<32x128xf32> to vector<32x64xf32>
    %103 = arith.maximumf %101, %102 : vector<32x64xf32>
    %104 = vector.shape_cast %103 : vector<32x64xf32> to vector<2x2x8x64xf32>
    %105 = vector.extract_strided_slice %104 {offsets = [0, 0, 0, 0], sizes = [2, 1, 8, 64], strides = [1, 1, 1, 1]} : vector<2x2x8x64xf32> to vector<2x1x8x64xf32>
    %106 = vector.shape_cast %105 : vector<2x1x8x64xf32> to vector<2x8x64xf32>
    %107 = vector.extract_strided_slice %104 {offsets = [0, 1, 0, 0], sizes = [2, 1, 8, 64], strides = [1, 1, 1, 1]} : vector<2x2x8x64xf32> to vector<2x1x8x64xf32>
    %108 = vector.shape_cast %107 : vector<2x1x8x64xf32> to vector<2x8x64xf32>
    %109 = arith.maximumf %106, %108 : vector<2x8x64xf32>
    %c0_87 = arith.constant 0 : index
    %c0_88 = arith.constant 0 : index
    %110 = vector.load %arg7[%c0_87, %c0_88] : memref<1x64xf32, #tpu.memory_space<vmem>>, vector<1x64xf32>
    %111 = vector.shape_cast %110 : vector<1x64xf32> to vector<1x1x64xf32>
    %112 = vector.broadcast %111 : vector<1x1x64xf32> to vector<2x8x64xf32>
    %113 = arith.addf %109, %112 : vector<2x8x64xf32>
    %cst_89 = arith.constant 0.000000e+00 : f32
    %114 = vector.broadcast %cst_89 : f32 to vector<2x8x64xf32>
    %115 = arith.cmpf oge, %113, %114 : vector<2x8x64xf32>
    %cst_90 = arith.constant 2.000000e-01 : f32
    %116 = vector.broadcast %cst_90 : f32 to vector<2x8x64xf32>
    %117 = arith.mulf %116, %113 : vector<2x8x64xf32>
    %118 = arith.select %115, %113, %117 : vector<2x8x64xi1>, vector<2x8x64xf32>
    %119 = vector.extract_strided_slice %118 {offsets = [0, 0, 0], sizes = [1, 8, 64], strides = [1, 1, 1]} : vector<2x8x64xf32> to vector<1x8x64xf32>
    %120 = vector.shape_cast %119 : vector<1x8x64xf32> to vector<8x64xf32>
    %c0_91 = arith.constant 0 : index
    %c0_92 = arith.constant 0 : index
    %c0_93 = arith.constant 0 : index
    %121 = vector.load %arg8[%c0_91, %c0_92, %c0_93] : memref<2x64x10xf32, #tpu.memory_space<vmem>>, vector<1x64x10xf32>
    %122 = vector.shape_cast %121 : vector<1x64x10xf32> to vector<64x10xf32>
    %cst_94 = arith.constant dense<0.000000e+00> : vector<8x10xf32>
    %123 = tpu.matmul %120, %122, %cst_94 {dimension_numbers = #tpu.dot_dimension_numbers<[1], [0], [0], [1], [0, 0, 1, 1], [], []>} : vector<8x64xf32>, vector<64x10xf32>, vector<8x10xf32> -> vector<8x10xf32>
    %124 = vector.extract_strided_slice %118 {offsets = [1, 0, 0], sizes = [1, 8, 64], strides = [1, 1, 1]} : vector<2x8x64xf32> to vector<1x8x64xf32>
    %125 = vector.shape_cast %124 : vector<1x8x64xf32> to vector<8x64xf32>
    %c1_95 = arith.constant 1 : index
    %c0_96 = arith.constant 0 : index
    %c0_97 = arith.constant 0 : index
    %126 = vector.load %arg8[%c1_95, %c0_96, %c0_97] : memref<2x64x10xf32, #tpu.memory_space<vmem>>, vector<1x64x10xf32>
    %127 = vector.shape_cast %126 : vector<1x64x10xf32> to vector<64x10xf32>
    %cst_98 = arith.constant dense<0.000000e+00> : vector<8x10xf32>
    %128 = tpu.matmul %125, %127, %cst_98 {dimension_numbers = #tpu.dot_dimension_numbers<[1], [0], [0], [1], [0, 0, 1, 1], [], []>} : vector<8x64xf32>, vector<64x10xf32>, vector<8x10xf32> -> vector<8x10xf32>
    %129 = arith.addf %123, %128 : vector<8x10xf32>
    %c0_99 = arith.constant 0 : index
    %c0_100 = arith.constant 0 : index
    %130 = vector.load %arg9[%c0_99, %c0_100] : memref<1x10xf32, #tpu.memory_space<vmem>>, vector<1x10xf32>
    %131 = vector.broadcast %130 : vector<1x10xf32> to vector<8x10xf32>
    %132 = arith.addf %129, %131 : vector<8x10xf32>
    %c0_101 = arith.constant 0 : index
    %c0_102 = arith.constant 0 : index
    %133 = vector.load %arg10[%c0_101, %c0_102] : memref<8x10xf32, #tpu.memory_space<vmem>>, vector<8x10xf32>
    tpu.vector_store %arg10[%c0_101, %c0_102], %132 {strides = array<i32>} : memref<8x10xf32, #tpu.memory_space<vmem>>, vector<8x10xf32>,
    return
  }
  func.func @transform_0(%arg0: i32) -> (i32, i32, i32) {
    %c0_i32 = arith.constant 0 : i32
    %c0_i32_0 = arith.constant 0 : i32
    %c0_i32_1 = arith.constant 0 : i32
    return %c0_i32, %arg0, %c0_i32_0 : i32, i32, i32
  }
  func.func @transform_1(%arg0: i32) -> (i32, i32, i32) {
    %c0_i32 = arith.constant 0 : i32
    %c0_i32_0 = arith.constant 0 : i32
    %c0_i32_1 = arith.constant 0 : i32
    %c0_i32_2 = arith.constant 0 : i32
    return %c0_i32, %c0_i32_0, %c0_i32_1 : i32, i32, i32
  }
  func.func @transform_2(%arg0: i32) -> (i32, i32) {
    %c0_i32 = arith.constant 0 : i32
    %c0_i32_0 = arith.constant 0 : i32
    %c0_i32_1 = arith.constant 0 : i32
    return %c0_i32, %c0_i32_0 : i32, i32
  }
  func.func @transform_3(%arg0: i32) -> (i32, i32, i32) {
    %c0_i32 = arith.constant 0 : i32
    %c0_i32_0 = arith.constant 0 : i32
    %c0_i32_1 = arith.constant 0 : i32
    %c0_i32_2 = arith.constant 0 : i32
    return %c0_i32, %c0_i32_0, %c0_i32_1 : i32, i32, i32
  }
  func.func @transform_4(%arg0: i32) -> (i32, i32) {
    %c0_i32 = arith.constant 0 : i32
    %c0_i32_0 = arith.constant 0 : i32
    %c0_i32_1 = arith.constant 0 : i32
    return %c0_i32, %c0_i32_0 : i32, i32
  }
  func.func @transform_5(%arg0: i32) -> (i32, i32, i32) {
    %c0_i32 = arith.constant 0 : i32
    %c0_i32_0 = arith.constant 0 : i32
    %c0_i32_1 = arith.constant 0 : i32
    %c0_i32_2 = arith.constant 0 : i32
    return %c0_i32, %c0_i32_0, %c0_i32_1 : i32, i32, i32
  }
  func.func @transform_6(%arg0: i32) -> (i32, i32) {
    %c0_i32 = arith.constant 0 : i32
    %c0_i32_0 = arith.constant 0 : i32
    %c0_i32_1 = arith.constant 0 : i32
    return %c0_i32, %c0_i32_0 : i32, i32
  }
  func.func @transform_7(%arg0: i32) -> (i32, i32, i32) {
    %c0_i32 = arith.constant 0 : i32
    %c0_i32_0 = arith.constant 0 : i32
    %c0_i32_1 = arith.constant 0 : i32
    %c0_i32_2 = arith.constant 0 : i32
    return %c0_i32, %c0_i32_0, %c0_i32_1 : i32, i32, i32
  }
  func.func @transform_8(%arg0: i32) -> (i32, i32) {
    %c0_i32 = arith.constant 0 : i32
    %c0_i32_0 = arith.constant 0 : i32
    %c0_i32_1 = arith.constant 0 : i32
    return %c0_i32, %c0_i32_0 : i32, i32
  }
  func.func @transform_9(%arg0: i32) -> (i32, i32) {
    %c0_i32 = arith.constant 0 : i32
    %c0_i32_0 = arith.constant 0 : i32
    return %arg0, %c0_i32 : i32, i32
  }
}

</mosaic_0001>

<llo_original>
// kernel: ta_forward.1
$region0: #{ta_forward.1}
  #allocation0 [shape = 'u32[]', space=smem, size = 0x4, offset = 0x4, fixed_abs, tag = 'smem constant byte address 0x4 - core index']
  #allocation1 [shape = 'u32[144,128]{1,0:T(1,128)}', space=vmem, size = 0x12000, scoped, tag = 'internal scratch']
  #allocation2 [shape = 'f32[10,8,128]{2,1,0:T(8,128)}', space=vmem, size = 0xa000, scoped, tag = 'scratch operand']
  #allocation3 [shape = 'f32[6,8,128]{2,1,0:T(8,128)}', space=vmem, size = 0x6000, scoped, tag = 'scratch operand']
  %s0 = inlined_call_operand.vmem [shape: f32[33,8,128], index: 0, kind: input, shape index: {}]
  %s1 = inlined_call_operand.vmem [shape: f32[3,128,256], index: 1, kind: input, shape index: {}]
  %s2 = inlined_call_operand.vmem [shape: f32[1,128], index: 2, kind: input, shape index: {}]
  %s3 = inlined_call_operand.vmem [shape: f32[3,128,256], index: 3, kind: input, shape index: {}]
  %s4 = inlined_call_operand.vmem [shape: f32[1,128], index: 4, kind: input, shape index: {}]
  %s5 = inlined_call_operand.vmem [shape: f32[3,128,128], index: 5, kind: input, shape index: {}]
  %s6 = inlined_call_operand.vmem [shape: f32[1,64], index: 6, kind: input, shape index: {}]
  %s7 = inlined_call_operand.vmem [shape: f32[2,64,10], index: 7, kind: input, shape index: {}]
  %s8 = inlined_call_operand.vmem [shape: f32[1,10], index: 8, kind: input, shape index: {}]
  %s9 = inlined_call_operand.vmem [shape: f32[8,10], index: 9, kind: output, shape index: {}]
  %s10 = sld [smem:[#allocation0]]
  $region46: #{ta_forward.1} parent=0
    _
  %s12 = ssub.s32 1, %s10
  %s13 = scalar_select 0, %s12, %s10
  // Predicated region
  $region2: #{ta_forward.1} parent=0 // pred_check
    _
  $region3: #{ta_forward.1} parent=0 // pred_check_branch
    %15 = sbr.rel (0) target = $region5
  $region4: #{ta_forward.1} parent=0 // pred_region
    _
  $region5: #{ta_forward.1} parent=0 // pred_fallthru
    _
  // Predicated region
  $region6: #{ta_forward.1} parent=0 // pred_check
    _
  $region7: #{ta_forward.1} parent=0 // pred_check_branch
    %17 = sbr.rel (0) target = $region9
  $region8: #{ta_forward.1} parent=0 // pred_region
    _
  $region9: #{ta_forward.1} parent=0 // pred_fallthru
    _
  // Predicated region
  $region10: #{ta_forward.1} parent=0 // pred_check
    _
  $region11: #{ta_forward.1} parent=0 // pred_check_branch
    %19 = sbr.rel (0) target = $region13
  $region12: #{ta_forward.1} parent=0 // pred_region
    _
  $region13: #{ta_forward.1} parent=0 // pred_fallthru
    _
  // Predicated region
  $region14: #{ta_forward.1} parent=0 // pred_check
    _
  $region15: #{ta_forward.1} parent=0 // pred_check_branch
    %21 = sbr.rel (0) target = $region17
  $region16: #{ta_forward.1} parent=0 // pred_region
    _
  $region17: #{ta_forward.1} parent=0 // pred_fallthru
    _
  // Predicated region
  $region18: #{ta_forward.1} parent=0 // pred_check
    _
  $region19: #{ta_forward.1} parent=0 // pred_check_branch
    %23 = sbr.rel (0) target = $region21
  $region20: #{ta_forward.1} parent=0 // pred_region
    _
  $region21: #{ta_forward.1} parent=0 // pred_fallthru
    _
  // Predicated region
  $region22: #{ta_forward.1} parent=0 // pred_check
    _
  $region23: #{ta_forward.1} parent=0 // pred_check_branch
    %25 = sbr.rel (0) target = $region25
  $region24: #{ta_forward.1} parent=0 // pred_region
    _
  $region25: #{ta_forward.1} parent=0 // pred_fallthru
    _
  // Predicated region
  $region26: #{ta_forward.1} parent=0 // pred_check
    _
  $region27: #{ta_forward.1} parent=0 // pred_check_branch
    %27 = sbr.rel (0) target = $region29
  $region28: #{ta_forward.1} parent=0 // pred_region
    _
  $region29: #{ta_forward.1} parent=0 // pred_fallthru
    _
  // Predicated region
  $region30: #{ta_forward.1} parent=0 // pred_check
    _
  $region31: #{ta_forward.1} parent=0 // pred_check_branch
    %29 = sbr.rel (0) target = $region33
  $region32: #{ta_forward.1} parent=0 // pred_region
    _
  $region33: #{ta_forward.1} parent=0 // pred_fallthru
    _
  // Predicated region
  $region34: #{ta_forward.1} parent=0 // pred_check
    _
  $region35: #{ta_forward.1} parent=0 // pred_check_branch
    %31 = sbr.rel (0) target = $region37
  $region36: #{ta_forward.1} parent=0 // pred_region
    _
  $region37: #{ta_forward.1} parent=0 // pred_fallthru
    _
  %v32 = vld [vmem:[%s0] sm:$0xff]
  %v33 = vld [vmem:[%s0 + $0x8] sm:$0xff]
  %v34 = vld [vmem:[%s0 + $0x10] sm:$0xff]
  %v35 = vld [vmem:[%s0 + $0x18] sm:$0xff]
  %v36 = vld [vmem:[%s0 + $0x20] sm:$0xff]
  %v37 = vld [vmem:[%s0 + $0x28] sm:$0xff]
  %v38 = vld [vmem:[%s0 + $0x30] sm:$0xff]
  %v39 = vld [vmem:[%s0 + $0x38] sm:$0xff]
  %v40 = vld [vmem:[%s0 + $0x40] sm:$0xff]
  %v41 = vld [vmem:[%s0 + $0x48] sm:$0xff]
  %v42 = vld [vmem:[%s0 + $0x50] sm:$0xff]
  %v43 = vld [vmem:[%s0 + $0x58] sm:$0xff]
  %v44 = vld [vmem:[%s0 + $0x60] sm:$0xff]
  %v45 = vld [vmem:[%s0 + $0x68] sm:$0xff]
  %v46 = vld [vmem:[%s0 + $0x70] sm:$0xff]
  %v47 = vld [vmem:[%s0 + $0x78] sm:$0xff]
  %v48 = vld [vmem:[%s1] sm:$0xff]
  %v49 = vld [vmem:[%s1 + $0x8] sm:$0xff]
  %v50 = vld [vmem:[%s1 + $0x10] sm:$0xff]
  %v51 = vld [vmem:[%s1 + $0x18] sm:$0xff]
  %v52 = vld [vmem:[%s1 + $0x20] sm:$0xff]
  %v53 = vld [vmem:[%s1 + $0x28] sm:$0xff]
  %v54 = vld [vmem:[%s1 + $0x30] sm:$0xff]
  %v55 = vld [vmem:[%s1 + $0x38] sm:$0xff]
  %v56 = vld [vmem:[%s1 + $0x40] sm:$0xff]
  %v57 = vld [vmem:[%s1 + $0x48] sm:$0xff]
  %v58 = vld [vmem:[%s1 + $0x50] sm:$0xff]
  %v59 = vld [vmem:[%s1 + $0x58] sm:$0xff]
  %v60 = vld [vmem:[%s1 + $0x60] sm:$0xff]
  %v61 = vld [vmem:[%s1 + $0x68] sm:$0xff]
  %v62 = vld [vmem:[%s1 + $0x70] sm:$0xff]
  %v63 = vld [vmem:[%s1 + $0x78] sm:$0xff]
  %v64 = vld [vmem:[%s1 + $0x80] sm:$0xff]
  %v65 = vld [vmem:[%s1 + $0x88] sm:$0xff]
  %v66 = vld [vmem:[%s1 + $0x90] sm:$0xff]
  %v67 = vld [vmem:[%s1 + $0x98] sm:$0xff]
  %v68 = vld [vmem:[%s1 + $0xa0] sm:$0xff]
  %v69 = vld [vmem:[%s1 + $0xa8] sm:$0xff]
  %v70 = vld [vmem:[%s1 + $0xb0] sm:$0xff]
  %v71 = vld [vmem:[%s1 + $0xb8] sm:$0xff]
  %v72 = vld [vmem:[%s1 + $0xc0] sm:$0xff]
  %v73 = vld [vmem:[%s1 + $0xc8] sm:$0xff]
  %v74 = vld [vmem:[%s1 + $0xd0] sm:$0xff]
  %v75 = vld [vmem:[%s1 + $0xd8] sm:$0xff]
  %v76 = vld [vmem:[%s1 + $0xe0] sm:$0xff]
  %v77 = vld [vmem:[%s1 + $0xe8] sm:$0xff]
  %v78 = vld [vmem:[%s1 + $0xf0] sm:$0xff]
  %v79 = vld [vmem:[%s1 + $0xf8] sm:$0xff]
  %s80 = scalar_lea.vmem %s0, 136
  %v81 = vld [vmem:[%s80] sm:$0xff]
  %v82 = vld [vmem:[%s80 + $0x8] sm:$0xff]
  %v83 = vld [vmem:[%s80 + $0x10] sm:$0xff]
  %v84 = vld [vmem:[%s80 + $0x18] sm:$0xff]
  %v85 = vld [vmem:[%s80 + $0x20] sm:$0xff]
  %v86 = vld [vmem:[%s80 + $0x28] sm:$0xff]
  %v87 = vld [vmem:[%s80 + $0x30] sm:$0xff]
  %v88 = vld [vmem:[%s80 + $0x38] sm:$0xff]
  %v89 = vld [vmem:[%s80 + $0x40] sm:$0xff]
  %v90 = vld [vmem:[%s80 + $0x48] sm:$0xff]
  %v91 = vld [vmem:[%s80 + $0x50] sm:$0xff]
  %v92 = vld [vmem:[%s80 + $0x58] sm:$0xff]
  %v93 = vld [vmem:[%s80 + $0x60] sm:$0xff]
  %v94 = vld [vmem:[%s80 + $0x68] sm:$0xff]
  %v95 = vld [vmem:[%s80 + $0x70] sm:$0xff]
  %v96 = vld [vmem:[%s80 + $0x78] sm:$0xff]
  %s97 = scalar_lea.vmem %s1, 256
  %v98 = vld [vmem:[%s97] sm:$0xff]
  %v99 = vld [vmem:[%s97 + $0x8] sm:$0xff]
  %v100 = vld [vmem:[%s97 + $0x10] sm:$0xff]
  %v101 = vld [vmem:[%s97 + $0x18] sm:$0xff]
  %v102 = vld [vmem:[%s97 + $0x20] sm:$0xff]
  %v103 = vld [vmem:[%s97 + $0x28] sm:$0xff]
  %v104 = vld [vmem:[%s97 + $0x30] sm:$0xff]
  %v105 = vld [vmem:[%s97 + $0x38] sm:$0xff]
  %v106 = vld [vmem:[%s97 + $0x40] sm:$0xff]
  %v107 = vld [vmem:[%s97 + $0x48] sm:$0xff]
  %v108 = vld [vmem:[%s97 + $0x50] sm:$0xff]
  %v109 = vld [vmem:[%s97 + $0x58] sm:$0xff]
  %v110 = vld [vmem:[%s97 + $0x60] sm:$0xff]
  %v111 = vld [vmem:[%s97 + $0x68] sm:$0xff]
  %v112 = vld [vmem:[%s97 + $0x70] sm:$0xff]
  %v113 = vld [vmem:[%s97 + $0x78] sm:$0xff]
  %v114 = vld [vmem:[%s97 + $0x80] sm:$0xff]
  %v115 = vld [vmem:[%s97 + $0x88] sm:$0xff]
  %v116 = vld [vmem:[%s97 + $0x90] sm:$0xff]
  %v117 = vld [vmem:[%s97 + $0x98] sm:$0xff]
  %v118 = vld [vmem:[%s97 + $0xa0] sm:$0xff]
  %v119 = vld [vmem:[%s97 + $0xa8] sm:$0xff]
  %v120 = vld [vmem:[%s97 + $0xb0] sm:$0xff]
  %v121 = vld [vmem:[%s97 + $0xb8] sm:$0xff]
  %v122 = vld [vmem:[%s97 + $0xc0] sm:$0xff]
  %v123 = vld [vmem:[%s97 + $0xc8] sm:$0xff]
  %v124 = vld [vmem:[%s97 + $0xd0] sm:$0xff]
  %v125 = vld [vmem:[%s97 + $0xd8] sm:$0xff]
  %v126 = vld [vmem:[%s97 + $0xe0] sm:$0xff]
  %v127 = vld [vmem:[%s97 + $0xe8] sm:$0xff]
  %v128 = vld [vmem:[%s97 + $0xf0] sm:$0xff]
  %v129 = vld [vmem:[%s97 + $0xf8] sm:$0xff]
  %130 = vmatprep.subr.mxu0 %v99
  %131 = vmatpush1.msra.mxu0 %v98
  %132 = vmatprep.subr.mxu0 %v101
  %133 = vmatpush1.msra.mxu0 %v100
  %134 = vmatprep.subr.mxu0 %v103
  %135 = vmatpush1.msra.mxu0 %v102
  %136 = vmatprep.subr.mxu0 %v105
  %137 = vmatpush1.msra.mxu0 %v104
  %138 = vmatprep.subr.mxu0 %v107
  %139 = vmatpush1.msra.mxu0 %v106
  %140 = vmatprep.subr.mxu0 %v109
  %141 = vmatpush1.msra.mxu0 %v108
  %142 = vmatprep.subr.mxu0 %v111
  %143 = vmatpush1.msra.mxu0 %v110
  %144 = vmatprep.subr.mxu0 %v113
  %145 = vmatpush1.msra.mxu0 %v112
  %146 = vmatprep.subr.mxu0 %v115
  %147 = vmatpush1.msra.mxu0 %v114
  %148 = vmatprep.subr.mxu0 %v117
  %149 = vmatpush1.msra.mxu0 %v116
  %150 = vmatprep.subr.mxu0 %v119
  %151 = vmatpush1.msra.mxu0 %v118
  %152 = vmatprep.subr.mxu0 %v121
  %153 = vmatpush1.msra.mxu0 %v120
  %154 = vmatprep.subr.mxu0 %v123
  %155 = vmatpush1.msra.mxu0 %v122
  %156 = vmatprep.subr.mxu0 %v125
  %157 = vmatpush1.msra.mxu0 %v124
  %158 = vmatprep.subr.mxu0 %v127
  %159 = vmatpush1.msra.mxu0 %v126
  %160 = vmatprep.subr.mxu0 %v129
  %161 = vmatpush1.msra.mxu0 %v128
  %162 = vmatprep.subr.mxu0 0.0
  %163 = vmatpush1.msra.mxu0 0.0
  %164 = vmatprep.subr.mxu0 0.0
  %165 = vmatpush1.msra.mxu0 0.0
  %166 = vmatprep.subr.mxu0 0.0
  %167 = vmatpush1.msra.mxu0 0.0
  %168 = vmatprep.subr.mxu0 0.0
  %169 = vmatpush1.msra.mxu0 0.0
  %170 = vmatprep.subr.mxu0 0.0
  %171 = vmatpush1.msra.mxu0 0.0
  %172 = vmatprep.subr.mxu0 0.0
  %173 = vmatpush1.msra.mxu0 0.0
  %174 = vmatprep.subr.mxu0 0.0
  %175 = vmatpush1.msra.mxu0 0.0
  %176 = vmatprep.subr.mxu0 0.0
  %177 = vmatpush1.msra.mxu0 0.0
  %178 = vmatprep.subr.mxu0 0.0
  %179 = vmatpush1.msra.mxu0 0.0
  %180 = vmatprep.subr.mxu0 0.0
  %181 = vmatpush1.msra.mxu0 0.0
  %182 = vmatprep.subr.mxu0 0.0
  %183 = vmatpush1.msra.mxu0 0.0
  %184 = vmatprep.subr.mxu0 0.0
  %185 = vmatpush1.msra.mxu0 0.0
  %186 = vmatprep.subr.mxu0 0.0
  %187 = vmatpush1.msra.mxu0 0.0
  %188 = vmatprep.subr.mxu0 0.0
  %189 = vmatpush1.msra.mxu0 0.0
  %190 = vmatprep.subr.mxu0 0.0
  %191 = vmatpush1.msra.mxu0 0.0
  %192 = vmatprep.subr.mxu0 0.0
  %193 = vmatpush1.msra.mxu0 0.0
  %194 = vmatprep.mubr.f32.mxu0 0.0
  %195 = vmatmul.mubr.f32.gmra.mrb[0].mxu0 %v81
  %v196 = vpop.f32.mrb[0].mxu0
  %v197 = vadd.f32 0.0, %v196
  %v198 = vpop.f32.mrb[0].mxu0
  %v199 = vadd.f32 0.0, %v198
  %200 = vmatprep.mubr.f32.mxu0 0.0
  %201 = vmatmul.mubr.f32.gmra.mrb[0].mxu0 %v82
  %v202 = vpop.f32.mrb[0].mxu0
  %v203 = vadd.f32 0.0, %v202
  %v204 = vpop.f32.mrb[0].mxu0
  %v205 = vadd.f32 0.0, %v204
  %206 = vmatprep.mubr.f32.mxu0 0.0
  %207 = vmatmul.mubr.f32.gmra.mrb[0].mxu0 %v83
  %v208 = vpop.f32.mrb[0].mxu0
  %v209 = vadd.f32 0.0, %v208
  %v210 = vpop.f32.mrb[0].mxu0
  %v211 = vadd.f32 0.0, %v210
  %212 = vmatprep.mubr.f32.mxu0 0.0
  %213 = vmatmul.mubr.f32.gmra.mrb[0].mxu0 %v84
  %v214 = vpop.f32.mrb[0].mxu0
  %v215 = vadd.f32 0.0, %v214
  %v216 = vpop.f32.mrb[0].mxu0
  %v217 = vadd.f32 0.0, %v216
  %218 = vmatprep.mubr.f32.mxu0 0.0
  %219 = vmatmul.mubr.f32.gmra.mrb[0].mxu0 %v85
  %v220 = vpop.f32.mrb[0].mxu0
  %v221 = vadd.f32 0.0, %v220
  %v222 = vpop.f32.mrb[0].mxu0
  %v223 = vadd.f32 0.0, %v222
  %224 = vmatprep.mubr.f32.mxu0 0.0
  %225 = vmatmul.mubr.f32.gmra.mrb[0].mxu0 %v86
  %v226 = vpop.f32.mrb[0].mxu0
  %v227 = vadd.f32 0.0, %v226
  %v228 = vpop.f32.mrb[0].mxu0
  %v229 = vadd.f32 0.0, %v228
  %230 = vmatprep.mubr.f32.mxu0 0.0
  %231 = vmatmul.mubr.f32.gmra.mrb[0].mxu0 %v87
  %v232 = vpop.f32.mrb[0].mxu0
  %v233 = vadd.f32 0.0, %v232
  %v234 = vpop.f32.mrb[0].mxu0
  %v235 = vadd.f32 0.0, %v234
  %236 = vmatprep.mubr.f32.mxu0 0.0
  %237 = vmatmul.mubr.f32.gmra.mrb[0].mxu0 %v88
  %v238 = vpop.f32.mrb[0].mxu0
  %v239 = vadd.f32 0.0, %v238
  %v240 = vpop.f32.mrb[0].mxu0
  %v241 = vadd.f32 0.0, %v240
  %242 = vmatprep.mubr.f32.mxu0 0.0
  %243 = vmatmul.mubr.f32.gmra.mrb[0].mxu0 %v89
  %v244 = vpop.f32.mrb[0].mxu0
  %v245 = vadd.f32 0.0, %v244
  %v246 = vpop.f32.mrb[0].mxu0
  %v247 = vadd.f32 0.0, %v246
  %248 = vmatprep.mubr.f32.mxu0 0.0
  %249 = vmatmul.mubr.f32.gmra.mrb[0].mxu0 %v90
  %v250 = vpop.f32.mrb[0].mxu0
  %v251 = vadd.f32 0.0, %v250
  %v252 = vpop.f32.mrb[0].mxu0
  %v253 = vadd.f32 0.0, %v252
  %254 = vmatprep.mubr.f32.mxu0 0.0
  %255 = vmatmul.mubr.f32.gmra.mrb[0].mxu0 %v91
  %v256 = vpop.f32.mrb[0].mxu0
  %v257 = vadd.f32 0.0, %v256
  %v258 = vpop.f32.mrb[0].mxu0
  %v259 = vadd.f32 0.0, %v258
  %260 = vmatprep.mubr.f32.mxu0 0.0
  %261 = vmatmul.mubr.f32.gmra.mrb[0].mxu0 %v92
  %v262 = vpop.f32.mrb[0].mxu0
  %v263 = vadd.f32 0.0, %v262
  %v264 = vpop.f32.mrb[0].mxu0
  %v265 = vadd.f32 0.0, %v264
  %266 = vmatprep.mubr.f32.mxu0 0.0
  %267 = vmatmul.mubr.f32.gmra.mrb[0].mxu0 %v93
  %v268 = vpop.f32.mrb[0].mxu0
  %v269 = vadd.f32 0.0, %v268
  %v270 = vpop.f32.mrb[0].mxu0
  %v271 = vadd.f32 0.0, %v270
  %272 = vmatprep.mubr.f32.mxu0 0.0
  %273 = vmatmul.mubr.f32.gmra.mrb[0].mxu0 %v94
  %v274 = vpop.f32.mrb[0].mxu0
  %v275 = vadd.f32 0.0, %v274
  %v276 = vpop.f32.mrb[0].mxu0
  %v277 = vadd.f32 0.0, %v276
  %278 = vmatprep.mubr.f32.mxu0 0.0
  %279 = vmatmul.mubr.f32.gmra.mrb[0].mxu0 %v95
  %v280 = vpop.f32.mrb[0].mxu0
  %v281 = vadd.f32 0.0, %v280
  %v282 = vpop.f32.mrb[0].mxu0
  %v283 = vadd.f32 0.0, %v282
  %284 = vmatprep.mubr.f32.mxu0 0.0
  %285 = vmatmul.mubr.f32.gmra.mrb[0].mxu0 %v96
  %v286 = vpop.f32.mrb[0].mxu0
  %v287 = vadd.f32 0.0, %v286
  %v288 = vpop.f32.mrb[0].mxu0
  %v289 = vadd.f32 0.0, %v288
  %290 = vdwg.mxu0
  %291 = vmatprep.subr.mxu0 %v49
  %292 = vmatpush1.msra.mxu0 %v48
  %293 = vmatprep.subr.mxu0 %v51
  %294 = vmatpush1.msra.mxu0 %v50
  %295 = vmatprep.subr.mxu0 %v53
  %296 = vmatpush1.msra.mxu0 %v52
  %297 = vmatprep.subr.mxu0 %v55
  %298 = vmatpush1.msra.mxu0 %v54
  %299 = vmatprep.subr.mxu0 %v57
  %300 = vmatpush1.msra.mxu0 %v56
  %301 = vmatprep.subr.mxu0 %v59
  %302 = vmatpush1.msra.mxu0 %v58
  %303 = vmatprep.subr.mxu0 %v61
  %304 = vmatpush1.msra.mxu0 %v60
  %305 = vmatprep.subr.mxu0 %v63
  %306 = vmatpush1.msra.mxu0 %v62
  %307 = vmatprep.subr.mxu0 %v65
  %308 = vmatpush1.msra.mxu0 %v64
  %309 = vmatprep.subr.mxu0 %v67
  %310 = vmatpush1.msra.mxu0 %v66
  %311 = vmatprep.subr.mxu0 %v69
  %312 = vmatpush1.msra.mxu0 %v68
  %313 = vmatprep.subr.mxu0 %v71
  %314 = vmatpush1.msra.mxu0 %v70
  %315 = vmatprep.subr.mxu0 %v73
  %316 = vmatpush1.msra.mxu0 %v72
  %317 = vmatprep.subr.mxu0 %v75
  %318 = vmatpush1.msra.mxu0 %v74
  %319 = vmatprep.subr.mxu0 %v77
  %320 = vmatpush1.msra.mxu0 %v76
  %321 = vmatprep.subr.mxu0 %v79
  %322 = vmatpush1.msra.mxu0 %v78
  %323 = vmatprep.subr.mxu0 0.0
  %324 = vmatpush1.msra.mxu0 0.0
  %325 = vmatprep.subr.mxu0 0.0
  %326 = vmatpush1.msra.mxu0 0.0
  %327 = vmatprep.subr.mxu0 0.0
  %328 = vmatpush1.msra.mxu0 0.0
  %329 = vmatprep.subr.mxu0 0.0
  %330 = vmatpush1.msra.mxu0 0.0
  %331 = vmatprep.subr.mxu0 0.0
  %332 = vmatpush1.msra.mxu0 0.0
  %333 = vmatprep.subr.mxu0 0.0
  %334 = vmatpush1.msra.mxu0 0.0
  %335 = vmatprep.subr.mxu0 0.0
  %336 = vmatpush1.msra.mxu0 0.0
  %337 = vmatprep.subr.mxu0 0.0
  %338 = vmatpush1.msra.mxu0 0.0
  %339 = vmatprep.subr.mxu0 0.0
  %340 = vmatpush1.msra.mxu0 0.0
  %341 = vmatprep.subr.mxu0 0.0
  %342 = vmatpush1.msra.mxu0 0.0
  %343 = vmatprep.subr.mxu0 0.0
  %344 = vmatpush1.msra.mxu0 0.0
  %345 = vmatprep.subr.mxu0 0.0
  %346 = vmatpush1.msra.mxu0 0.0
  %347 = vmatprep.subr.mxu0 0.0
  %348 = vmatpush1.msra.mxu0 0.0
  %349 = vmatprep.subr.mxu0 0.0
  %350 = vmatpush1.msra.mxu0 0.0
  %351 = vmatprep.subr.mxu0 0.0
  %352 = vmatpush1.msra.mxu0 0.0
  %353 = vmatprep.subr.mxu0 0.0
  %354 = vmatpush1.msra.mxu0 0.0
  %355 = vmatprep.mubr.f32.mxu0 0.0
  %356 = vmatmul.mubr.f32.gmra.mrb[0].mxu0 %v32
  %v357 = vpop.f32.mrb[0].mxu0
  %v358 = vadd.f32 %v197, %v357
  %v359 = vpop.f32.mrb[0].mxu0
  %v360 = vadd.f32 %v199, %v359
  %361 = vmatprep.mubr.f32.mxu0 0.0
  %362 = vmatmul.mubr.f32.gmra.mrb[0].mxu0 %v33
  %v363 = vpop.f32.mrb[0].mxu0
  %v364 = vadd.f32 %v203, %v363
  %v365 = vpop.f32.mrb[0].mxu0
  %v366 = vadd.f32 %v205, %v365
  %367 = vmatprep.mubr.f32.mxu0 0.0
  %368 = vmatmul.mubr.f32.gmra.mrb[0].mxu0 %v34
  %v369 = vpop.f32.mrb[0].mxu0
  %v370 = vadd.f32 %v209, %v369
  %v371 = vpop.f32.mrb[0].mxu0
  %v372 = vadd.f32 %v211, %v371
  %373 = vmatprep.mubr.f32.mxu0 0.0
  %374 = vmatmul.mubr.f32.gmra.mrb[0].mxu0 %v35
  %v375 = vpop.f32.mrb[0].mxu0
  %v376 = vadd.f32 %v215, %v375
  %v377 = vpop.f32.mrb[0].mxu0
  %v378 = vadd.f32 %v217, %v377
  %379 = vmatprep.mubr.f32.mxu0 0.0
  %380 = vmatmul.mubr.f32.gmra.mrb[0].mxu0 %v36
  %v381 = vpop.f32.mrb[0].mxu0
  %v382 = vadd.f32 %v221, %v381
  %v383 = vpop.f32.mrb[0].mxu0
  %v384 = vadd.f32 %v223, %v383
  %385 = vmatprep.mubr.f32.mxu0 0.0
  %386 = vmatmul.mubr.f32.gmra.mrb[0].mxu0 %v37
  %v387 = vpop.f32.mrb[0].mxu0
  %v388 = vadd.f32 %v227, %v387
  %v389 = vpop.f32.mrb[0].mxu0
  %v390 = vadd.f32 %v229, %v389
  %391 = vmatprep.mubr.f32.mxu0 0.0
  %392 = vmatmul.mubr.f32.gmra.mrb[0].mxu0 %v38
  %v393 = vpop.f32.mrb[0].mxu0
  %v394 = vadd.f32 %v233, %v393
  %v395 = vpop.f32.mrb[0].mxu0
  %v396 = vadd.f32 %v235, %v395
  %397 = vmatprep.mubr.f32.mxu0 0.0
  %398 = vmatmul.mubr.f32.gmra.mrb[0].mxu0 %v39
  %v399 = vpop.f32.mrb[0].mxu0
  %v400 = vadd.f32 %v239, %v399
  %v401 = vpop.f32.mrb[0].mxu0
  %v402 = vadd.f32 %v241, %v401
  %403 = vmatprep.mubr.f32.mxu0 0.0
  %404 = vmatmul.mubr.f32.gmra.mrb[0].mxu0 %v40
  %v405 = vpop.f32.mrb[0].mxu0
  %v406 = vadd.f32 %v245, %v405
  %v407 = vpop.f32.mrb[0].mxu0
  %v408 = vadd.f32 %v247, %v407
  %409 = vmatprep.mubr.f32.mxu0 0.0
  %410 = vmatmul.mubr.f32.gmra.mrb[0].mxu0 %v41
  %v411 = vpop.f32.mrb[0].mxu0
  %v412 = vadd.f32 %v251, %v411
  %v413 = vpop.f32.mrb[0].mxu0
  %v414 = vadd.f32 %v253, %v413
  %415 = vmatprep.mubr.f32.mxu0 0.0
  %416 = vmatmul.mubr.f32.gmra.mrb[0].mxu0 %v42
  %v417 = vpop.f32.mrb[0].mxu0
  %v418 = vadd.f32 %v257, %v417
  %v419 = vpop.f32.mrb[0].mxu0
  %v420 = vadd.f32 %v259, %v419
  %421 = vmatprep.mubr.f32.mxu0 0.0
  %422 = vmatmul.mubr.f32.gmra.mrb[0].mxu0 %v43
  %v423 = vpop.f32.mrb[0].mxu0
  %v424 = vadd.f32 %v263, %v423
  %v425 = vpop.f32.mrb[0].mxu0
  %v426 = vadd.f32 %v265, %v425
  %427 = vmatprep.mubr.f32.mxu0 0.0
  %428 = vmatmul.mubr.f32.gmra.mrb[0].mxu0 %v44
  %v429 = vpop.f32.mrb[0].mxu0
  %v430 = vadd.f32 %v269, %v429
  %v431 = vpop.f32.mrb[0].mxu0
  %v432 = vadd.f32 %v271, %v431
  %433 = vmatprep.mubr.f32.mxu0 0.0
  %434 = vmatmul.mubr.f32.gmra.mrb[0].mxu0 %v45
  %v435 = vpop.f32.mrb[0].mxu0
  %v436 = vadd.f32 %v275, %v435
  %v437 = vpop.f32.mrb[0].mxu0
  %v438 = vadd.f32 %v277, %v437
  %439 = vmatprep.mubr.f32.mxu0 0.0
  %440 = vmatmul.mubr.f32.gmra.mrb[0].mxu0 %v46
  %v441 = vpop.f32.mrb[0].mxu0
  %v442 = vadd.f32 %v281, %v441
  %v443 = vpop.f32.mrb[0].mxu0
  %v444 = vadd.f32 %v283, %v443
  %445 = vmatprep.mubr.f32.mxu0 0.0
  %446 = vmatmul.mubr.f32.gmra.mrb[0].mxu0 %v47
  %v447 = vpop.f32.mrb[0].mxu0
  %v448 = vadd.f32 %v287, %v447
  %v449 = vpop.f32.mrb[0].mxu0
  %v450 = vadd.f32 %v289, %v449
  %451 = vdwg.mxu0
  %s452 = scalar_lea.vmem %s0, 8
  %v453 = vld [vmem:[%s452] sm:$0xff]
  %v454 = vld [vmem:[%s452 + $0x8] sm:$0xff]
  %v455 = vld [vmem:[%s452 + $0x10] sm:$0xff]
  %v456 = vld [vmem:[%s452 + $0x18] sm:$0xff]
  %v457 = vld [vmem:[%s452 + $0x20] sm:$0xff]
  %v458 = vld [vmem:[%s452 + $0x28] sm:$0xff]
  %v459 = vld [vmem:[%s452 + $0x30] sm:$0xff]
  %v460 = vld [vmem:[%s452 + $0x38] sm:$0xff]
  %v461 = vld [vmem:[%s452 + $0x40] sm:$0xff]
  %v462 = vld [vmem:[%s452 + $0x48] sm:$0xff]
  %v463 = vld [vmem:[%s452 + $0x50] sm:$0xff]
  %v464 = vld [vmem:[%s452 + $0x58] sm:$0xff]
  %v465 = vld [vmem:[%s452 + $0x60] sm:$0xff]
  %v466 = vld [vmem:[%s452 + $0x68] sm:$0xff]
  %v467 = vld [vmem:[%s452 + $0x70] sm:$0xff]
  %v468 = vld [vmem:[%s452 + $0x78] sm:$0xff]
  %s469 = scalar_lea.vmem %s1, 512
  %v470 = vld [vmem:[%s469] sm:$0xff]
  %v471 = vld [vmem:[%s469 + $0x8] sm:$0xff]
  %v472 = vld [vmem:[%s469 + $0x10] sm:$0xff]
  %v473 = vld [vmem:[%s469 + $0x18] sm:$0xff]
  %v474 = vld [vmem:[%s469 + $0x20] sm:$0xff]
  %v475 = vld [vmem:[%s469 + $0x28] sm:$0xff]
  %v476 = vld [vmem:[%s469 + $0x30] sm:$0xff]
  %v477 = vld [vmem:[%s469 + $0x38] sm:$0xff]
  %v478 = vld [vmem:[%s469 + $0x40] sm:$0xff]
  %v479 = vld [vmem:[%s469 + $0x48] sm:$0xff]
  %v480 = vld [vmem:[%s469 + $0x50] sm:$0xff]
  %v481 = vld [vmem:[%s469 + $0x58] sm:$0xff]
  %v482 = vld [vmem:[%s469 + $0x60] sm:$0xff]
  %v483 = vld [vmem:[%s469 + $0x68] sm:$0xff]
  %v484 = vld [vmem:[%s469 + $0x70] sm:$0xff]
  %v485 = vld [vmem:[%s469 + $0x78] sm:$0xff]
  %v486 = vld [vmem:[%s469 + $0x80] sm:$0xff]
  %v487 = vld [vmem:[%s469 + $0x88] sm:$0xff]
  %v488 = vld [vmem:[%s469 + $0x90] sm:$0xff]
  %v489 = vld [vmem:[%s469 + $0x98] sm:$0xff]
  %v490 = vld [vmem:[%s469 + $0xa0] sm:$0xff]
  %v491 = vld [vmem:[%s469 + $0xa8] sm:$0xff]
  %v492 = vld [vmem:[%s469 + $0xb0] sm:$0xff]
  %v493 = vld [vmem:[%s469 + $0xb8] sm:$0xff]
  %v494 = vld [vmem:[%s469 + $0xc0] sm:$0xff]
  %v495 = vld [vmem:[%s469 + $0xc8] sm:$0xff]
  %v496 = vld [vmem:[%s469 + $0xd0] sm:$0xff]
  %v497 = vld [vmem:[%s469 + $0xd8] sm:$0xff]
  %v498 = vld [vmem:[%s469 + $0xe0] sm:$0xff]
  %v499 = vld [vmem:[%s469 + $0xe8] sm:$0xff]
  %v500 = vld [vmem:[%s469 + $0xf0] sm:$0xff]
  %v501 = vld [vmem:[%s469 + $0xf8] sm:$0xff]
  %502 = vmatprep.subr.mxu0 %v471
  %503 = vmatpush1.msra.mxu0 %v470
  %504 = vmatprep.subr.mxu0 %v473
  %505 = vmatpush1.msra.mxu0 %v472
  %506 = vmatprep.subr.mxu0 %v475
  %507 = vmatpush1.msra.mxu0 %v474
  %508 = vmatprep.subr.mxu0 %v477
  %509 = vmatpush1.msra.mxu0 %v476
  %510 = vmatprep.subr.mxu0 %v479
  %511 = vmatpush1.msra.mxu0 %v478
  %512 = vmatprep.subr.mxu0 %v481
  %513 = vmatpush1.msra.mxu0 %v480
  %514 = vmatprep.subr.mxu0 %v483
  %515 = vmatpush1.msra.mxu0 %v482
  %516 = vmatprep.subr.mxu0 %v485
  %517 = vmatpush1.msra.mxu0 %v484
  %518 = vmatprep.subr.mxu0 %v487
  %519 = vmatpush1.msra.mxu0 %v486
  %520 = vmatprep.subr.mxu0 %v489
  %521 = vmatpush1.msra.mxu0 %v488
  %522 = vmatprep.subr.mxu0 %v491
  %523 = vmatpush1.msra.mxu0 %v490
  %524 = vmatprep.subr.mxu0 %v493
  %525 = vmatpush1.msra.mxu0 %v492
  %526 = vmatprep.subr.mxu0 %v495
  %527 = vmatpush1.msra.mxu0 %v494
  %528 = vmatprep.subr.mxu0 %v497
  %529 = vmatpush1.msra.mxu0 %v496
  %530 = vmatprep.subr.mxu0 %v499
  %531 = vmatpush1.msra.mxu0 %v498
  %532 = vmatprep.subr.mxu0 %v501
  %533 = vmatpush1.msra.mxu0 %v500
  %534 = vmatprep.subr.mxu0 0.0
  %535 = vmatpush1.msra.mxu0 0.0
  %536 = vmatprep.subr.mxu0 0.0
  %537 = vmatpush1.msra.mxu0 0.0
  %538 = vmatprep.subr.mxu0 0.0
  %539 = vmatpush1.msra.mxu0 0.0
  %540 = vmatprep.subr.mxu0 0.0
  %541 = vmatpush1.msra.mxu0 0.0
  %542 = vmatprep.subr.mxu0 0.0
  %543 = vmatpush1.msra.mxu0 0.0
  %544 = vmatprep.subr.mxu0 0.0
  %545 = vmatpush1.msra.mxu0 0.0
  %546 = vmatprep.subr.mxu0 0.0
  %547 = vmatpush1.msra.mxu0 0.0
  %548 = vmatprep.subr.mxu0 0.0
  %549 = vmatpush1.msra.mxu0 0.0
  %550 = vmatprep.subr.mxu0 0.0
  %551 = vmatpush1.msra.mxu0 0.0
  %552 = vmatprep.subr.mxu0 0.0
  %553 = vmatpush1.msra.mxu0 0.0
  %554 = vmatprep.subr.mxu0 0.0
  %555 = vmatpush1.msra.mxu0 0.0
  %556 = vmatprep.subr.mxu0 0.0
  %557 = vmatpush1.msra.mxu0 0.0
  %558 = vmatprep.subr.mxu0 0.0
  %559 = vmatpush1.msra.mxu0 0.0
  %560 = vmatprep.subr.mxu0 0.0
  %561 = vmatpush1.msra.mxu0 0.0
  %562 = vmatprep.subr.mxu0 0.0
  %563 = vmatpush1.msra.mxu0 0.0
  %564 = vmatprep.subr.mxu0 0.0
  %565 = vmatpush1.msra.mxu0 0.0
  %566 = vmatprep.mubr.f32.mxu0 0.0
  %567 = vmatmul.mubr.f32.gmra.mrb[0].mxu0 %v453
  %v568 = vpop.f32.mrb[0].mxu0
  %v569 = vadd.f32 0.0, %v568
  %v570 = vpop.f32.mrb[0].mxu0
  %v571 = vadd.f32 0.0, %v570
  %572 = vmatprep.mubr.f32.mxu0 0.0
  %573 = vmatmul.mubr.f32.gmra.mrb[0].mxu0 %v454
  %v574 = vpop.f32.mrb[0].mxu0
  %v575 = vadd.f32 0.0, %v574
  %v576 = vpop.f32.mrb[0].mxu0
  %v577 = vadd.f32 0.0, %v576
  %578 = vmatprep.mubr.f32.mxu0 0.0
  %579 = vmatmul.mubr.f32.gmra.mrb[0].mxu0 %v455
  %v580 = vpop.f32.mrb[0].mxu0
  %v581 = vadd.f32 0.0, %v580
  %v582 = vpop.f32.mrb[0].mxu0
  %v583 = vadd.f32 0.0, %v582
  %584 = vmatprep.mubr.f32.mxu0 0.0
  %585 = vmatmul.mubr.f32.gmra.mrb[0].mxu0 %v456
  %v586 = vpop.f32.mrb[0].mxu0
  %v587 = vadd.f32 0.0, %v586
  %v588 = vpop.f32.mrb[0].mxu0
  %v589 = vadd.f32 0.0, %v588
  %590 = vmatprep.mubr.f32.mxu0 0.0
  %591 = vmatmul.mubr.f32.gmra.mrb[0].mxu0 %v457
  %v592 = vpop.f32.mrb[0].mxu0
  %v593 = vadd.f32 0.0, %v592
  %v594 = vpop.f32.mrb[0].mxu0
  %v595 = vadd.f32 0.0, %v594
  %596 = vmatprep.mubr.f32.mxu0 0.0
  %597 = vmatmul.mubr.f32.gmra.mrb[0].mxu0 %v458
  %v598 = vpop.f32.mrb[0].mxu0
  %v599 = vadd.f32 0.0, %v598
  %v600 = vpop.f32.mrb[0].mxu0
  %v601 = vadd.f32 0.0, %v600
  %602 = vmatprep.mubr.f32.mxu0 0.0
  %603 = vmatmul.mubr.f32.gmra.mrb[0].mxu0 %v459
  %v604 = vpop.f32.mrb[0].mxu0
  %v605 = vadd.f32 0.0, %v604
  %v606 = vpop.f32.mrb[0].mxu0
  %v607 = vadd.f32 0.0, %v606
  %608 = vmatprep.mubr.f32.mxu0 0.0
  %609 = vmatmul.mubr.f32.gmra.mrb[0].mxu0 %v460
  %v610 = vpop.f32.mrb[0].mxu0
  %v611 = vadd.f32 0.0, %v610
  %v612 = vpop.f32.mrb[0].mxu0
  %v613 = vadd.f32 0.0, %v612
  %614 = vmatprep.mubr.f32.mxu0 0.0
  %615 = vmatmul.mubr.f32.gmra.mrb[0].mxu0 %v461
  %v616 = vpop.f32.mrb[0].mxu0
  %v617 = vadd.f32 0.0, %v616
  %v618 = vpop.f32.mrb[0].mxu0
  %v619 = vadd.f32 0.0, %v618
  %620 = vmatprep.mubr.f32.mxu0 0.0
  %621 = vmatmul.mubr.f32.gmra.mrb[0].mxu0 %v462
  %v622 = vpop.f32.mrb[0].mxu0
  %v623 = vadd.f32 0.0, %v622
  %v624 = vpop.f32.mrb[0].mxu0
  %v625 = vadd.f32 0.0, %v624
  %626 = vmatprep.mubr.f32.mxu0 0.0
  %627 = vmatmul.mubr.f32.gmra.mrb[0].mxu0 %v463
  %v628 = vpop.f32.mrb[0].mxu0
  %v629 = vadd.f32 0.0, %v628
  %v630 = vpop.f32.mrb[0].mxu0
  %v631 = vadd.f32 0.0, %v630
  %632 = vmatprep.mubr.f32.mxu0 0.0
  %633 = vmatmul.mubr.f32.gmra.mrb[0].mxu0 %v464
  %v634 = vpop.f32.mrb[0].mxu0
  %v635 = vadd.f32 0.0, %v634
  %v636 = vpop.f32.mrb[0].mxu0
  %v637 = vadd.f32 0.0, %v636
  %638 = vmatprep.mubr.f32.mxu0 0.0
  %639 = vmatmul.mubr.f32.gmra.mrb[0].mxu0 %v465
  %v640 = vpop.f32.mrb[0].mxu0
  %v641 = vadd.f32 0.0, %v640
  %v642 = vpop.f32.mrb[0].mxu0
  %v643 = vadd.f32 0.0, %v642
  %644 = vmatprep.mubr.f32.mxu0 0.0
  %645 = vmatmul.mubr.f32.gmra.mrb[0].mxu0 %v466
  %v646 = vpop.f32.mrb[0].mxu0
  %v647 = vadd.f32 0.0, %v646
  %v648 = vpop.f32.mrb[0].mxu0
  %v649 = vadd.f32 0.0, %v648
  %650 = vmatprep.mubr.f32.mxu0 0.0
  %651 = vmatmul.mubr.f32.gmra.mrb[0].mxu0 %v467
  %v652 = vpop.f32.mrb[0].mxu0
  %v653 = vadd.f32 0.0, %v652
  %v654 = vpop.f32.mrb[0].mxu0
  %v655 = vadd.f32 0.0, %v654
  %656 = vmatprep.mubr.f32.mxu0 0.0
  %657 = vmatmul.mubr.f32.gmra.mrb[0].mxu0 %v468
  %v658 = vpop.f32.mrb[0].mxu0
  %v659 = vadd.f32 0.0, %v658
  %v660 = vpop.f32.mrb[0].mxu0
  %v661 = vadd.f32 0.0, %v660
  %662 = vdwg.mxu0
  %v663 = vadd.f32 %v358, %v569
  %v664 = vadd.f32 %v360, %v571
  %v665 = vadd.f32 %v364, %v575
  %v666 = vadd.f32 %v366, %v577
  %v667 = vadd.f32 %v370, %v581
  %v668 = vadd.f32 %v372, %v583
  %v669 = vadd.f32 %v376, %v587
  %v670 = vadd.f32 %v378, %v589
  %v671 = vadd.f32 %v382, %v593
  %v672 = vadd.f32 %v384, %v595
  %v673 = vadd.f32 %v388, %v599
  %v674 = vadd.f32 %v390, %v601
  %v675 = vadd.f32 %v394, %v605
  %v676 = vadd.f32 %v396, %v607
  %v677 = vadd.f32 %v400, %v611
  %v678 = vadd.f32 %v402, %v613
  %v679 = vadd.f32 %v406, %v617
  %v680 = vadd.f32 %v408, %v619
  %v681 = vadd.f32 %v412, %v623
  %v682 = vadd.f32 %v414, %v625
  %v683 = vadd.f32 %v418, %v629
  %v684 = vadd.f32 %v420, %v631
  %v685 = vadd.f32 %v424, %v635
  %v686 = vadd.f32 %v426, %v637
  %v687 = vadd.f32 %v430, %v641
  %v688 = vadd.f32 %v432, %v643
  %v689 = vadd.f32 %v436, %v647
  %v690 = vadd.f32 %v438, %v649
  %v691 = vadd.f32 %v442, %v653
  %v692 = vadd.f32 %v444, %v655
  %v693 = vadd.f32 %v448, %v659
  %v694 = vadd.f32 %v450, %v661
  %v695 = vmax.f32 %v663, %v664
  %v696 = vmax.f32 %v665, %v666
  %v697 = vmax.f32 %v667, %v668
  %v698 = vmax.f32 %v669, %v670
  %v699 = vmax.f32 %v671, %v672
  %v700 = vmax.f32 %v673, %v674
  %v701 = vmax.f32 %v675, %v676
  %v702 = vmax.f32 %v677, %v678
  %v703 = vmax.f32 %v679, %v680
  %v704 = vmax.f32 %v681, %v682
  %v705 = vmax.f32 %v683, %v684
  %v706 = vmax.f32 %v685, %v686
  %v707 = vmax.f32 %v687, %v688
  %v708 = vmax.f32 %v689, %v690
  %v709 = vmax.f32 %v691, %v692
  %v710 = vmax.f32 %v693, %v694
  %v711 = vmax.f32 %v695, %v696
  %v712 = vmax.f32 %v697, %v698
  %v713 = vmax.f32 %v699, %v700
  %v714 = vmax.f32 %v701, %v702
  %v715 = vmax.f32 %v703, %v704
  %v716 = vmax.f32 %v705, %v706
  %v717 = vmax.f32 %v707, %v708
  %v718 = vmax.f32 %v709, %v710
  %v719 = vld [vmem:[%s2] sm:$0x1]
  %v721 = vlaneseq
  %v722 = vshrl.u32 %v721, 7
  %v723 = vsub.s32 0, %v722
  %v724 = vrot.slane %v719, %v723
  %v726 = vadd.f32 %v711, %v724
  %v727 = vadd.f32 %v712, %v724
  %v728 = vadd.f32 %v713, %v724
  %v729 = vadd.f32 %v714, %v724
  %v730 = vadd.f32 %v715, %v724
  %v731 = vadd.f32 %v716, %v724
  %v732 = vadd.f32 %v717, %v724
  %v733 = vadd.f32 %v718, %v724
  %vm734 = vcmp.ge.f32.partialorder %v726, 0.0
  %vm735 = vcmp.ge.f32.partialorder %v727, 0.0
  %vm736 = vcmp.ge.f32.partialorder %v728, 0.0
  %vm737 = vcmp.ge.f32.partialorder %v729, 0.0
  %vm738 = vcmp.ge.f32.partialorder %v730, 0.0
  %vm739 = vcmp.ge.f32.partialorder %v731, 0.0
  %vm740 = vcmp.ge.f32.partialorder %v732, 0.0
  %vm741 = vcmp.ge.f32.partialorder %v733, 0.0
  %v742 = vmul.f32 %v726, 0.2
  %v743 = vmul.f32 %v727, 0.2
  %v744 = vmul.f32 %v728, 0.2
  %v745 = vmul.f32 %v729, 0.2
  %v746 = vmul.f32 %v730, 0.2
  %v747 = vmul.f32 %v731, 0.2
  %v748 = vmul.f32 %v732, 0.2
  %v749 = vmul.f32 %v733, 0.2
  %v750 = vsel %vm734, %v726, %v742
  %v751 = vsel %vm735, %v727, %v743
  %v752 = vsel %vm736, %v728, %v744
  %v753 = vsel %vm737, %v729, %v745
  %v754 = vsel %vm738, %v730, %v746
  %v755 = vsel %vm739, %v731, %v747
  %v756 = vsel %vm740, %v732, %v748
  %v757 = vsel %vm741, %v733, %v749
  %758 = vst [vmem:[#allocation2] sm:$0xff] 0.0
  %s759 = scalar_lea.vmem [#allocation2], 72
  %760 = vst [vmem:[%s759] sm:$0xff] 0.0
  %s761 = scalar_lea.vmem [#allocation2], 8
  %762 = vst [vmem:[%s761] sm:$0xff] %v750
  %763 = vst [vmem:[%s761 + $0x8] sm:$0xff] %v751
  %764 = vst [vmem:[%s761 + $0x10] sm:$0xff] %v752
  %765 = vst [vmem:[%s761 + $0x18] sm:$0xff] %v753
  %766 = vst [vmem:[%s761 + $0x20] sm:$0xff] %v754
  %767 = vst [vmem:[%s761 + $0x28] sm:$0xff] %v755
  %768 = vst [vmem:[%s761 + $0x30] sm:$0xff] %v756
  %769 = vst [vmem:[%s761 + $0x38] sm:$0xff] %v757
  %v770 = vld [vmem:[#allocation2] sm:$0xff]
  %v771 = vld [vmem:[#allocation2 + $0x8] sm:$0xff]
  %v772 = vld [vmem:[#allocation2 + $0x10] sm:$0xff]
  %v773 = vld [vmem:[#allocation2 + $0x18] sm:$0xff]
  %v774 = vld [vmem:[#allocation2 + $0x20] sm:$0xff]
  %v775 = vld [vmem:[#allocation2 + $0x28] sm:$0xff]
  %v776 = vld [vmem:[#allocation2 + $0x30] sm:$0xff]
  %v777 = vld [vmem:[#allocation2 + $0x38] sm:$0xff]
  %v778 = vld [vmem:[%s3] sm:$0xff]
  %v779 = vld [vmem:[%s3 + $0x8] sm:$0xff]
  %v780 = vld [vmem:[%s3 + $0x10] sm:$0xff]
  %v781 = vld [vmem:[%s3 + $0x18] sm:$0xff]
  %v782 = vld [vmem:[%s3 + $0x20] sm:$0xff]
  %v783 = vld [vmem:[%s3 + $0x28] sm:$0xff]
  %v784 = vld [vmem:[%s3 + $0x30] sm:$0xff]
  %v785 = vld [vmem:[%s3 + $0x38] sm:$0xff]
  %v786 = vld [vmem:[%s3 + $0x40] sm:$0xff]
  %v787 = vld [vmem:[%s3 + $0x48] sm:$0xff]
  %v788 = vld [vmem:[%s3 + $0x50] sm:$0xff]
  %v789 = vld [vmem:[%s3 + $0x58] sm:$0xff]
  %v790 = vld [vmem:[%s3 + $0x60] sm:$0xff]
  %v791 = vld [vmem:[%s3 + $0x68] sm:$0xff]
  %v792 = vld [vmem:[%s3 + $0x70] sm:$0xff]
  %v793 = vld [vmem:[%s3 + $0x78] sm:$0xff]
  %v794 = vld [vmem:[%s3 + $0x80] sm:$0xff]
  %v795 = vld [vmem:[%s3 + $0x88] sm:$0xff]
  %v796 = vld [vmem:[%s3 + $0x90] sm:$0xff]
  %v797 = vld [vmem:[%s3 + $0x98] sm:$0xff]
  %v798 = vld [vmem:[%s3 + $0xa0] sm:$0xff]
  %v799 = vld [vmem:[%s3 + $0xa8] sm:$0xff]
  %v800 = vld [vmem:[%s3 + $0xb0] sm:$0xff]
  %v801 = vld [vmem:[%s3 + $0xb8] sm:$0xff]
  %v802 = vld [vmem:[%s3 + $0xc0] sm:$0xff]
  %v803 = vld [vmem:[%s3 + $0xc8] sm:$0xff]
  %v804 = vld [vmem:[%s3 + $0xd0] sm:$0xff]
  %v805 = vld [vmem:[%s3 + $0xd8] sm:$0xff]
  %v806 = vld [vmem:[%s3 + $0xe0] sm:$0xff]
  %v807 = vld [vmem:[%s3 + $0xe8] sm:$0xff]
  %v808 = vld [vmem:[%s3 + $0xf0] sm:$0xff]
  %v809 = vld [vmem:[%s3 + $0xf8] sm:$0xff]
  %v810 = vld [vmem:[%s761] sm:$0xff]
  %v811 = vld [vmem:[%s761 + $0x8] sm:$0xff]
  %v812 = vld [vmem:[%s761 + $0x10] sm:$0xff]
  %v813 = vld [vmem:[%s761 + $0x18] sm:$0xff]
  %v814 = vld [vmem:[%s761 + $0x20] sm:$0xff]
  %v815 = vld [vmem:[%s761 + $0x28] sm:$0xff]
  %v816 = vld [vmem:[%s761 + $0x30] sm:$0xff]
  %v817 = vld [vmem:[%s761 + $0x38] sm:$0xff]
  %s818 = scalar_lea.vmem %s3, 256
  %v819 = vld [vmem:[%s818] sm:$0xff]
  %v820 = vld [vmem:[%s818 + $0x8] sm:$0xff]
  %v821 = vld [vmem:[%s818 + $0x10] sm:$0xff]
  %v822 = vld [vmem:[%s818 + $0x18] sm:$0xff]
  %v823 = vld [vmem:[%s818 + $0x20] sm:$0xff]
  %v824 = vld [vmem:[%s818 + $0x28] sm:$0xff]
  %v825 = vld [vmem:[%s818 + $0x30] sm:$0xff]
  %v826 = vld [vmem:[%s818 + $0x38] sm:$0xff]
  %v827 = vld [vmem:[%s818 + $0x40] sm:$0xff]
  %v828 = vld [vmem:[%s818 + $0x48] sm:$0xff]
  %v829 = vld [vmem:[%s818 + $0x50] sm:$0xff]
  %v830 = vld [vmem:[%s818 + $0x58] sm:$0xff]
  %v831 = vld [vmem:[%s818 + $0x60] sm:$0xff]
  %v832 = vld [vmem:[%s818 + $0x68] sm:$0xff]
  %v833 = vld [vmem:[%s818 + $0x70] sm:$0xff]
  %v834 = vld [vmem:[%s818 + $0x78] sm:$0xff]
  %v835 = vld [vmem:[%s818 + $0x80] sm:$0xff]
  %v836 = vld [vmem:[%s818 + $0x88] sm:$0xff]
  %v837 = vld [vmem:[%s818 + $0x90] sm:$0xff]
  %v838 = vld [vmem:[%s818 + $0x98] sm:$0xff]
  %v839 = vld [vmem:[%s818 + $0xa0] sm:$0xff]
  %v840 = vld [vmem:[%s818 + $0xa8] sm:$0xff]
  %v841 = vld [vmem:[%s818 + $0xb0] sm:$0xff]
  %v842 = vld [vmem:[%s818 + $0xb8] sm:$0xff]
  %v843 = vld [vmem:[%s818 + $0xc0] sm:$0xff]
  %v844 = vld [vmem:[%s818 + $0xc8] sm:$0xff]
  %v845 = vld [vmem:[%s818 + $0xd0] sm:$0xff]
  %v846 = vld [vmem:[%s818 + $0xd8] sm:$0xff]
  %v847 = vld [vmem:[%s818 + $0xe0] sm:$0xff]
  %v848 = vld [vmem:[%s818 + $0xe8] sm:$0xff]
  %v849 = vld [vmem:[%s818 + $0xf0] sm:$0xff]
  %v850 = vld [vmem:[%s818 + $0xf8] sm:$0xff]
  %851 = vmatprep.subr.mxu0 %v820
  %852 = vmatpush1.msra.mxu0 %v819
  %853 = vmatprep.subr.mxu0 %v822
  %854 = vmatpush1.msra.mxu0 %v821
  %855 = vmatprep.subr.mxu0 %v824
  %856 = vmatpush1.msra.mxu0 %v823
  %857 = vmatprep.subr.mxu0 %v826
  %858 = vmatpush1.msra.mxu0 %v825
  %859 = vmatprep.subr.mxu0 %v828
  %860 = vmatpush1.msra.mxu0 %v827
  %861 = vmatprep.subr.mxu0 %v830
  %862 = vmatpush1.msra.mxu0 %v829
  %863 = vmatprep.subr.mxu0 %v832
  %864 = vmatpush1.msra.mxu0 %v831
  %865 = vmatprep.subr.mxu0 %v834
  %866 = vmatpush1.msra.mxu0 %v833
  %867 = vmatprep.subr.mxu0 %v836
  %868 = vmatpush1.msra.mxu0 %v835
  %869 = vmatprep.subr.mxu0 %v838
  %870 = vmatpush1.msra.mxu0 %v837
  %871 = vmatprep.subr.mxu0 %v840
  %872 = vmatpush1.msra.mxu0 %v839
  %873 = vmatprep.subr.mxu0 %v842
  %874 = vmatpush1.msra.mxu0 %v841
  %875 = vmatprep.subr.mxu0 %v844
  %876 = vmatpush1.msra.mxu0 %v843
  %877 = vmatprep.subr.mxu0 %v846
  %878 = vmatpush1.msra.mxu0 %v845
  %879 = vmatprep.subr.mxu0 %v848
  %880 = vmatpush1.msra.mxu0 %v847
  %881 = vmatprep.subr.mxu0 %v850
  %882 = vmatpush1.msra.mxu0 %v849
  %883 = vmatprep.subr.mxu0 0.0
  %884 = vmatpush1.msra.mxu0 0.0
  %885 = vmatprep.subr.mxu0 0.0
  %886 = vmatpush1.msra.mxu0 0.0
  %887 = vmatprep.subr.mxu0 0.0
  %888 = vmatpush1.msra.mxu0 0.0
  %889 = vmatprep.subr.mxu0 0.0
  %890 = vmatpush1.msra.mxu0 0.0
  %891 = vmatprep.subr.mxu0 0.0
  %892 = vmatpush1.msra.mxu0 0.0
  %893 = vmatprep.subr.mxu0 0.0
  %894 = vmatpush1.msra.mxu0 0.0
  %895 = vmatprep.subr.mxu0 0.0
  %896 = vmatpush1.msra.mxu0 0.0
  %897 = vmatprep.subr.mxu0 0.0
  %898 = vmatpush1.msra.mxu0 0.0
  %899 = vmatprep.subr.mxu0 0.0
  %900 = vmatpush1.msra.mxu0 0.0
  %901 = vmatprep.subr.mxu0 0.0
  %902 = vmatpush1.msra.mxu0 0.0
  %903 = vmatprep.subr.mxu0 0.0
  %904 = vmatpush1.msra.mxu0 0.0
  %905 = vmatprep.subr.mxu0 0.0
  %906 = vmatpush1.msra.mxu0 0.0
  %907 = vmatprep.subr.mxu0 0.0
  %908 = vmatpush1.msra.mxu0 0.0
  %909 = vmatprep.subr.mxu0 0.0
  %910 = vmatpush1.msra.mxu0 0.0
  %911 = vmatprep.subr.mxu0 0.0
  %912 = vmatpush1.msra.mxu0 0.0
  %913 = vmatprep.subr.mxu0 0.0
  %914 = vmatpush1.msra.mxu0 0.0
  %915 = vmatprep.mubr.f32.mxu0 0.0
  %916 = vmatmul.mubr.f32.gmra.mrb[0].mxu0 %v810
  %v917 = vpop.f32.mrb[0].mxu0
  %v918 = vadd.f32 0.0, %v917
  %v919 = vpop.f32.mrb[0].mxu0
  %v920 = vadd.f32 0.0, %v919
  %921 = vmatprep.mubr.f32.mxu0 0.0
  %922 = vmatmul.mubr.f32.gmra.mrb[0].mxu0 %v811
  %v923 = vpop.f32.mrb[0].mxu0
  %v924 = vadd.f32 0.0, %v923
  %v925 = vpop.f32.mrb[0].mxu0
  %v926 = vadd.f32 0.0, %v925
  %927 = vmatprep.mubr.f32.mxu0 0.0
  %928 = vmatmul.mubr.f32.gmra.mrb[0].mxu0 %v812
  %v929 = vpop.f32.mrb[0].mxu0
  %v930 = vadd.f32 0.0, %v929
  %v931 = vpop.f32.mrb[0].mxu0
  %v932 = vadd.f32 0.0, %v931
  %933 = vmatprep.mubr.f32.mxu0 0.0
  %934 = vmatmul.mubr.f32.gmra.mrb[0].mxu0 %v813
  %v935 = vpop.f32.mrb[0].mxu0
  %v936 = vadd.f32 0.0, %v935
  %v937 = vpop.f32.mrb[0].mxu0
  %v938 = vadd.f32 0.0, %v937
  %939 = vmatprep.mubr.f32.mxu0 0.0
  %940 = vmatmul.mubr.f32.gmra.mrb[0].mxu0 %v814
  %v941 = vpop.f32.mrb[0].mxu0
  %v942 = vadd.f32 0.0, %v941
  %v943 = vpop.f32.mrb[0].mxu0
  %v944 = vadd.f32 0.0, %v943
  %945 = vmatprep.mubr.f32.mxu0 0.0
  %946 = vmatmul.mubr.f32.gmra.mrb[0].mxu0 %v815
  %v947 = vpop.f32.mrb[0].mxu0
  %v948 = vadd.f32 0.0, %v947
  %v949 = vpop.f32.mrb[0].mxu0
  %v950 = vadd.f32 0.0, %v949
  %951 = vmatprep.mubr.f32.mxu0 0.0
  %952 = vmatmul.mubr.f32.gmra.mrb[0].mxu0 %v816
  %v953 = vpop.f32.mrb[0].mxu0
  %v954 = vadd.f32 0.0, %v953
  %v955 = vpop.f32.mrb[0].mxu0
  %v956 = vadd.f32 0.0, %v955
  %957 = vmatprep.mubr.f32.mxu0 0.0
  %958 = vmatmul.mubr.f32.gmra.mrb[0].mxu0 %v817
  %v959 = vpop.f32.mrb[0].mxu0
  %v960 = vadd.f32 0.0, %v959
  %v961 = vpop.f32.mrb[0].mxu0
  %v962 = vadd.f32 0.0, %v961
  %963 = vdwg.mxu0
  %964 = vmatprep.subr.mxu0 %v779
  %965 = vmatpush1.msra.mxu0 %v778
  %966 = vmatprep.subr.mxu0 %v781
  %967 = vmatpush1.msra.mxu0 %v780
  %968 = vmatprep.subr.mxu0 %v783
  %969 = vmatpush1.msra.mxu0 %v782
  %970 = vmatprep.subr.mxu0 %v785
  %971 = vmatpush1.msra.mxu0 %v784
  %972 = vmatprep.subr.mxu0 %v787
  %973 = vmatpush1.msra.mxu0 %v786
  %974 = vmatprep.subr.mxu0 %v789
  %975 = vmatpush1.msra.mxu0 %v788
  %976 = vmatprep.subr.mxu0 %v791
  %977 = vmatpush1.msra.mxu0 %v790
  %978 = vmatprep.subr.mxu0 %v793
  %979 = vmatpush1.msra.mxu0 %v792
  %980 = vmatprep.subr.mxu0 %v795
  %981 = vmatpush1.msra.mxu0 %v794
  %982 = vmatprep.subr.mxu0 %v797
  %983 = vmatpush1.msra.mxu0 %v796
  %984 = vmatprep.subr.mxu0 %v799
  %985 = vmatpush1.msra.mxu0 %v798
  %986 = vmatprep.subr.mxu0 %v801
  %987 = vmatpush1.msra.mxu0 %v800
  %988 = vmatprep.subr.mxu0 %v803
  %989 = vmatpush1.msra.mxu0 %v802
  %990 = vmatprep.subr.mxu0 %v805
  %991 = vmatpush1.msra.mxu0 %v804
  %992 = vmatprep.subr.mxu0 %v807
  %993 = vmatpush1.msra.mxu0 %v806
  %994 = vmatprep.subr.mxu0 %v809
  %995 = vmatpush1.msra.mxu0 %v808
  %996 = vmatprep.subr.mxu0 0.0
  %997 = vmatpush1.msra.mxu0 0.0
  %998 = vmatprep.subr.mxu0 0.0
  %999 = vmatpush1.msra.mxu0 0.0
  %1000 = vmatprep.subr.mxu0 0.0
  %1001 = vmatpush1.msra.mxu0 0.0
  %1002 = vmatprep.subr.mxu0 0.0
  %1003 = vmatpush1.msra.mxu0 0.0
  %1004 = vmatprep.subr.mxu0 0.0
  %1005 = vmatpush1.msra.mxu0 0.0
  %1006 = vmatprep.subr.mxu0 0.0
  %1007 = vmatpush1.msra.mxu0 0.0
  %1008 = vmatprep.subr.mxu0 0.0
  %1009 = vmatpush1.msra.mxu0 0.0
  %1010 = vmatprep.subr.mxu0 0.0
  %1011 = vmatpush1.msra.mxu0 0.0
  %1012 = vmatprep.subr.mxu0 0.0
  %1013 = vmatpush1.msra.mxu0 0.0
  %1014 = vmatprep.subr.mxu0 0.0
  %1015 = vmatpush1.msra.mxu0 0.0
  %1016 = vmatprep.subr.mxu0 0.0
  %1017 = vmatpush1.msra.mxu0 0.0
  %1018 = vmatprep.subr.mxu0 0.0
  %1019 = vmatpush1.msra.mxu0 0.0
  %1020 = vmatprep.subr.mxu0 0.0
  %1021 = vmatpush1.msra.mxu0 0.0
  %1022 = vmatprep.subr.mxu0 0.0
  %1023 = vmatpush1.msra.mxu0 0.0
  %1024 = vmatprep.subr.mxu0 0.0
  %1025 = vmatpush1.msra.mxu0 0.0
  %1026 = vmatprep.subr.mxu0 0.0
  %1027 = vmatpush1.msra.mxu0 0.0
  %1028 = vmatprep.mubr.f32.mxu0 0.0
  %1029 = vmatmul.mubr.f32.gmra.mrb[0].mxu0 %v770
  %v1030 = vpop.f32.mrb[0].mxu0
  %v1031 = vadd.f32 %v918, %v1030
  %v1032 = vpop.f32.mrb[0].mxu0
  %v1033 = vadd.f32 %v920, %v1032
  %1034 = vmatprep.mubr.f32.mxu0 0.0
  %1035 = vmatmul.mubr.f32.gmra.mrb[0].mxu0 %v771
  %v1036 = vpop.f32.mrb[0].mxu0
  %v1037 = vadd.f32 %v924, %v1036
  %v1038 = vpop.f32.mrb[0].mxu0
  %v1039 = vadd.f32 %v926, %v1038
  %1040 = vmatprep.mubr.f32.mxu0 0.0
  %1041 = vmatmul.mubr.f32.gmra.mrb[0].mxu0 %v772
  %v1042 = vpop.f32.mrb[0].mxu0
  %v1043 = vadd.f32 %v930, %v1042
  %v1044 = vpop.f32.mrb[0].mxu0
  %v1045 = vadd.f32 %v932, %v1044
  %1046 = vmatprep.mubr.f32.mxu0 0.0
  %1047 = vmatmul.mubr.f32.gmra.mrb[0].mxu0 %v773
  %v1048 = vpop.f32.mrb[0].mxu0
  %v1049 = vadd.f32 %v936, %v1048
  %v1050 = vpop.f32.mrb[0].mxu0
  %v1051 = vadd.f32 %v938, %v1050
  %1052 = vmatprep.mubr.f32.mxu0 0.0
  %1053 = vmatmul.mubr.f32.gmra.mrb[0].mxu0 %v774
  %v1054 = vpop.f32.mrb[0].mxu0
  %v1055 = vadd.f32 %v942, %v1054
  %v1056 = vpop.f32.mrb[0].mxu0
  %v1057 = vadd.f32 %v944, %v1056
  %1058 = vmatprep.mubr.f32.mxu0 0.0
  %1059 = vmatmul.mubr.f32.gmra.mrb[0].mxu0 %v775
  %v1060 = vpop.f32.mrb[0].mxu0
  %v1061 = vadd.f32 %v948, %v1060
  %v1062 = vpop.f32.mrb[0].mxu0
  %v1063 = vadd.f32 %v950, %v1062
  %1064 = vmatprep.mubr.f32.mxu0 0.0
  %1065 = vmatmul.mubr.f32.gmra.mrb[0].mxu0 %v776
  %v1066 = vpop.f32.mrb[0].mxu0
  %v1067 = vadd.f32 %v954, %v1066
  %v1068 = vpop.f32.mrb[0].mxu0
  %v1069 = vadd.f32 %v956, %v1068
  %1070 = vmatprep.mubr.f32.mxu0 0.0
  %1071 = vmatmul.mubr.f32.gmra.mrb[0].mxu0 %v777
  %v1072 = vpop.f32.mrb[0].mxu0
  %v1073 = vadd.f32 %v960, %v1072
  %v1074 = vpop.f32.mrb[0].mxu0
  %v1075 = vadd.f32 %v962, %v1074
  %1076 = vdwg.mxu0
  %s1077 = scalar_lea.vmem [#allocation2], 16
  %v1078 = vld [vmem:[%s1077] sm:$0xff]
  %v1079 = vld [vmem:[%s1077 + $0x8] sm:$0xff]
  %v1080 = vld [vmem:[%s1077 + $0x10] sm:$0xff]
  %v1081 = vld [vmem:[%s1077 + $0x18] sm:$0xff]
  %v1082 = vld [vmem:[%s1077 + $0x20] sm:$0xff]
  %v1083 = vld [vmem:[%s1077 + $0x28] sm:$0xff]
  %v1084 = vld [vmem:[%s1077 + $0x30] sm:$0xff]
  %v1085 = vld [vmem:[%s1077 + $0x38] sm:$0xff]
  %s1086 = scalar_lea.vmem %s3, 512
  %v1087 = vld [vmem:[%s1086] sm:$0xff]
  %v1088 = vld [vmem:[%s1086 + $0x8] sm:$0xff]
  %v1089 = vld [vmem:[%s1086 + $0x10] sm:$0xff]
  %v1090 = vld [vmem:[%s1086 + $0x18] sm:$0xff]
  %v1091 = vld [vmem:[%s1086 + $0x20] sm:$0xff]
  %v1092 = vld [vmem:[%s1086 + $0x28] sm:$0xff]
  %v1093 = vld [vmem:[%s1086 + $0x30] sm:$0xff]
  %v1094 = vld [vmem:[%s1086 + $0x38] sm:$0xff]
  %v1095 = vld [vmem:[%s1086 + $0x40] sm:$0xff]
  %v1096 = vld [vmem:[%s1086 + $0x48] sm:$0xff]
  %v1097 = vld [vmem:[%s1086 + $0x50] sm:$0xff]
  %v1098 = vld [vmem:[%s1086 + $0x58] sm:$0xff]
  %v1099 = vld [vmem:[%s1086 + $0x60] sm:$0xff]
  %v1100 = vld [vmem:[%s1086 + $0x68] sm:$0xff]
  %v1101 = vld [vmem:[%s1086 + $0x70] sm:$0xff]
  %v1102 = vld [vmem:[%s1086 + $0x78] sm:$0xff]
  %v1103 = vld [vmem:[%s1086 + $0x80] sm:$0xff]
  %v1104 = vld [vmem:[%s1086 + $0x88] sm:$0xff]
  %v1105 = vld [vmem:[%s1086 + $0x90] sm:$0xff]
  %v1106 = vld [vmem:[%s1086 + $0x98] sm:$0xff]
  %v1107 = vld [vmem:[%s1086 + $0xa0] sm:$0xff]
  %v1108 = vld [vmem:[%s1086 + $0xa8] sm:$0xff]
  %v1109 = vld [vmem:[%s1086 + $0xb0] sm:$0xff]
  %v1110 = vld [vmem:[%s1086 + $0xb8] sm:$0xff]
  %v1111 = vld [vmem:[%s1086 + $0xc0] sm:$0xff]
  %v1112 = vld [vmem:[%s1086 + $0xc8] sm:$0xff]
  %v1113 = vld [vmem:[%s1086 + $0xd0] sm:$0xff]
  %v1114 = vld [vmem:[%s1086 + $0xd8] sm:$0xff]
  %v1115 = vld [vmem:[%s1086 + $0xe0] sm:$0xff]
  %v1116 = vld [vmem:[%s1086 + $0xe8] sm:$0xff]
  %v1117 = vld [vmem:[%s1086 + $0xf0] sm:$0xff]
  %v1118 = vld [vmem:[%s1086 + $0xf8] sm:$0xff]
  %1119 = vmatprep.subr.mxu0 %v1088
  %1120 = vmatpush1.msra.mxu0 %v1087
  %1121 = vmatprep.subr.mxu0 %v1090
  %1122 = vmatpush1.msra.mxu0 %v1089
  %1123 = vmatprep.subr.mxu0 %v1092
  %1124 = vmatpush1.msra.mxu0 %v1091
  %1125 = vmatprep.subr.mxu0 %v1094
  %1126 = vmatpush1.msra.mxu0 %v1093
  %1127 = vmatprep.subr.mxu0 %v1096
  %1128 = vmatpush1.msra.mxu0 %v1095
  %1129 = vmatprep.subr.mxu0 %v1098
  %1130 = vmatpush1.msra.mxu0 %v1097
  %1131 = vmatprep.subr.mxu0 %v1100
  %1132 = vmatpush1.msra.mxu0 %v1099
  %1133 = vmatprep.subr.mxu0 %v1102
  %1134 = vmatpush1.msra.mxu0 %v1101
  %1135 = vmatprep.subr.mxu0 %v1104
  %1136 = vmatpush1.msra.mxu0 %v1103
  %1137 = vmatprep.subr.mxu0 %v1106
  %1138 = vmatpush1.msra.mxu0 %v1105
  %1139 = vmatprep.subr.mxu0 %v1108
  %1140 = vmatpush1.msra.mxu0 %v1107
  %1141 = vmatprep.subr.mxu0 %v1110
  %1142 = vmatpush1.msra.mxu0 %v1109
  %1143 = vmatprep.subr.mxu0 %v1112
  %1144 = vmatpush1.msra.mxu0 %v1111
  %1145 = vmatprep.subr.mxu0 %v1114
  %1146 = vmatpush1.msra.mxu0 %v1113
  %1147 = vmatprep.subr.mxu0 %v1116
  %1148 = vmatpush1.msra.mxu0 %v1115
  %1149 = vmatprep.subr.mxu0 %v1118
  %1150 = vmatpush1.msra.mxu0 %v1117
  %1151 = vmatprep.subr.mxu0 0.0
  %1152 = vmatpush1.msra.mxu0 0.0
  %1153 = vmatprep.subr.mxu0 0.0
  %1154 = vmatpush1.msra.mxu0 0.0
  %1155 = vmatprep.subr.mxu0 0.0
  %1156 = vmatpush1.msra.mxu0 0.0
  %1157 = vmatprep.subr.mxu0 0.0
  %1158 = vmatpush1.msra.mxu0 0.0
  %1159 = vmatprep.subr.mxu0 0.0
  %1160 = vmatpush1.msra.mxu0 0.0
  %1161 = vmatprep.subr.mxu0 0.0
  %1162 = vmatpush1.msra.mxu0 0.0
  %1163 = vmatprep.subr.mxu0 0.0
  %1164 = vmatpush1.msra.mxu0 0.0
  %1165 = vmatprep.subr.mxu0 0.0
  %1166 = vmatpush1.msra.mxu0 0.0
  %1167 = vmatprep.subr.mxu0 0.0
  %1168 = vmatpush1.msra.mxu0 0.0
  %1169 = vmatprep.subr.mxu0 0.0
  %1170 = vmatpush1.msra.mxu0 0.0
  %1171 = vmatprep.subr.mxu0 0.0
  %1172 = vmatpush1.msra.mxu0 0.0
  %1173 = vmatprep.subr.mxu0 0.0
  %1174 = vmatpush1.msra.mxu0 0.0
  %1175 = vmatprep.subr.mxu0 0.0
  %1176 = vmatpush1.msra.mxu0 0.0
  %1177 = vmatprep.subr.mxu0 0.0
  %1178 = vmatpush1.msra.mxu0 0.0
  %1179 = vmatprep.subr.mxu0 0.0
  %1180 = vmatpush1.msra.mxu0 0.0
  %1181 = vmatprep.subr.mxu0 0.0
  %1182 = vmatpush1.msra.mxu0 0.0
  %1183 = vmatprep.mubr.f32.mxu0 0.0
  %1184 = vmatmul.mubr.f32.gmra.mrb[0].mxu0 %v1078
  %v1185 = vpop.f32.mrb[0].mxu0
  %v1186 = vadd.f32 0.0, %v1185
  %v1187 = vpop.f32.mrb[0].mxu0
  %v1188 = vadd.f32 0.0, %v1187
  %1189 = vmatprep.mubr.f32.mxu0 0.0
  %1190 = vmatmul.mubr.f32.gmra.mrb[0].mxu0 %v1079
  %v1191 = vpop.f32.mrb[0].mxu0
  %v1192 = vadd.f32 0.0, %v1191
  %v1193 = vpop.f32.mrb[0].mxu0
  %v1194 = vadd.f32 0.0, %v1193
  %1195 = vmatprep.mubr.f32.mxu0 0.0
  %1196 = vmatmul.mubr.f32.gmra.mrb[0].mxu0 %v1080
  %v1197 = vpop.f32.mrb[0].mxu0
  %v1198 = vadd.f32 0.0, %v1197
  %v1199 = vpop.f32.mrb[0].mxu0
  %v1200 = vadd.f32 0.0, %v1199
  %1201 = vmatprep.mubr.f32.mxu0 0.0
  %1202 = vmatmul.mubr.f32.gmra.mrb[0].mxu0 %v1081
  %v1203 = vpop.f32.mrb[0].mxu0
  %v1204 = vadd.f32 0.0, %v1203
  %v1205 = vpop.f32.mrb[0].mxu0
  %v1206 = vadd.f32 0.0, %v1205
  %1207 = vmatprep.mubr.f32.mxu0 0.0
  %1208 = vmatmul.mubr.f32.gmra.mrb[0].mxu0 %v1082
  %v1209 = vpop.f32.mrb[0].mxu0
  %v1210 = vadd.f32 0.0, %v1209
  %v1211 = vpop.f32.mrb[0].mxu0
  %v1212 = vadd.f32 0.0, %v1211
  %1213 = vmatprep.mubr.f32.mxu0 0.0
  %1214 = vmatmul.mubr.f32.gmra.mrb[0].mxu0 %v1083
  %v1215 = vpop.f32.mrb[0].mxu0
  %v1216 = vadd.f32 0.0, %v1215
  %v1217 = vpop.f32.mrb[0].mxu0
  %v1218 = vadd.f32 0.0, %v1217
  %1219 = vmatprep.mubr.f32.mxu0 0.0
  %1220 = vmatmul.mubr.f32.gmra.mrb[0].mxu0 %v1084
  %v1221 = vpop.f32.mrb[0].mxu0
  %v1222 = vadd.f32 0.0, %v1221
  %v1223 = vpop.f32.mrb[0].mxu0
  %v1224 = vadd.f32 0.0, %v1223
  %1225 = vmatprep.mubr.f32.mxu0 0.0
  %1226 = vmatmul.mubr.f32.gmra.mrb[0].mxu0 %v1085
  %v1227 = vpop.f32.mrb[0].mxu0
  %v1228 = vadd.f32 0.0, %v1227
  %v1229 = vpop.f32.mrb[0].mxu0
  %v1230 = vadd.f32 0.0, %v1229
  %1231 = vdwg.mxu0
  %v1232 = vadd.f32 %v1031, %v1186
  %v1233 = vadd.f32 %v1033, %v1188
  %v1234 = vadd.f32 %v1037, %v1192
  %v1235 = vadd.f32 %v1039, %v1194
  %v1236 = vadd.f32 %v1043, %v1198
  %v1237 = vadd.f32 %v1045, %v1200
  %v1238 = vadd.f32 %v1049, %v1204
  %v1239 = vadd.f32 %v1051, %v1206
  %v1240 = vadd.f32 %v1055, %v1210
  %v1241 = vadd.f32 %v1057, %v1212
  %v1242 = vadd.f32 %v1061, %v1216
  %v1243 = vadd.f32 %v1063, %v1218
  %v1244 = vadd.f32 %v1067, %v1222
  %v1245 = vadd.f32 %v1069, %v1224
  %v1246 = vadd.f32 %v1073, %v1228
  %v1247 = vadd.f32 %v1075, %v1230
  %v1248 = vmax.f32 %v1232, %v1233
  %v1249 = vmax.f32 %v1234, %v1235
  %v1250 = vmax.f32 %v1236, %v1237
  %v1251 = vmax.f32 %v1238, %v1239
  %v1252 = vmax.f32 %v1240, %v1241
  %v1253 = vmax.f32 %v1242, %v1243
  %v1254 = vmax.f32 %v1244, %v1245
  %v1255 = vmax.f32 %v1246, %v1247
  %v1256 = vmax.f32 %v1248, %v1249
  %v1257 = vmax.f32 %v1250, %v1251
  %v1258 = vmax.f32 %v1252, %v1253
  %v1259 = vmax.f32 %v1254, %v1255
  %v1260 = vld [vmem:[%s4] sm:$0x1]
  %v1262 = vlaneseq
  %v1263 = vshrl.u32 %v1262, 7
  %v1264 = vsub.s32 0, %v1263
  %v1265 = vrot.slane %v1260, %v1264
  %v1267 = vadd.f32 %v1256, %v1265
  %v1268 = vadd.f32 %v1257, %v1265
  %v1269 = vadd.f32 %v1258, %v1265
  %v1270 = vadd.f32 %v1259, %v1265
  %vm1271 = vcmp.ge.f32.partialorder %v1267, 0.0
  %vm1272 = vcmp.ge.f32.partialorder %v1268, 0.0
  %vm1273 = vcmp.ge.f32.partialorder %v1269, 0.0
  %vm1274 = vcmp.ge.f32.partialorder %v1270, 0.0
  %v1275 = vmul.f32 %v1267, 0.2
  %v1276 = vmul.f32 %v1268, 0.2
  %v1277 = vmul.f32 %v1269, 0.2
  %v1278 = vmul.f32 %v1270, 0.2
  %v1279 = vsel %vm1271, %v1267, %v1275
  %v1280 = vsel %vm1272, %v1268, %v1276
  %v1281 = vsel %vm1273, %v1269, %v1277
  %v1282 = vsel %vm1274, %v1270, %v1278
  %1283 = vst [vmem:[#allocation3] sm:$0xff] 0.0
  %s1284 = scalar_lea.vmem [#allocation3], 40
  %1285 = vst [vmem:[%s1284] sm:$0xff] 0.0
  %s1286 = scalar_lea.vmem [#allocation3], 8
  %1287 = vst [vmem:[%s1286] sm:$0xff] %v1279
  %1288 = vst [vmem:[%s1286 + $0x8] sm:$0xff] %v1280
  %1289 = vst [vmem:[%s1286 + $0x10] sm:$0xff] %v1281
  %1290 = vst [vmem:[%s1286 + $0x18] sm:$0xff] %v1282
  %v1291 = vld [vmem:[#allocation3] sm:$0xff]
  %v1292 = vld [vmem:[#allocation3 + $0x8] sm:$0xff]
  %v1293 = vld [vmem:[#allocation3 + $0x10] sm:$0xff]
  %v1294 = vld [vmem:[#allocation3 + $0x18] sm:$0xff]
  %v1295 = vld [vmem:[%s5] sm:$0xff]
  %v1296 = vld [vmem:[%s5 + $0x8] sm:$0xff]
  %v1297 = vld [vmem:[%s5 + $0x10] sm:$0xff]
  %v1298 = vld [vmem:[%s5 + $0x18] sm:$0xff]
  %v1299 = vld [vmem:[%s5 + $0x20] sm:$0xff]
  %v1300 = vld [vmem:[%s5 + $0x28] sm:$0xff]
  %v1301 = vld [vmem:[%s5 + $0x30] sm:$0xff]
  %v1302 = vld [vmem:[%s5 + $0x38] sm:$0xff]
  %v1303 = vld [vmem:[%s5 + $0x40] sm:$0xff]
  %v1304 = vld [vmem:[%s5 + $0x48] sm:$0xff]
  %v1305 = vld [vmem:[%s5 + $0x50] sm:$0xff]
  %v1306 = vld [vmem:[%s5 + $0x58] sm:$0xff]
  %v1307 = vld [vmem:[%s5 + $0x60] sm:$0xff]
  %v1308 = vld [vmem:[%s5 + $0x68] sm:$0xff]
  %v1309 = vld [vmem:[%s5 + $0x70] sm:$0xff]
  %v1310 = vld [vmem:[%s5 + $0x78] sm:$0xff]
  %v1311 = vld [vmem:[%s1286] sm:$0xff]
  %v1312 = vld [vmem:[%s1286 + $0x8] sm:$0xff]
  %v1313 = vld [vmem:[%s1286 + $0x10] sm:$0xff]
  %v1314 = vld [vmem:[%s1286 + $0x18] sm:$0xff]
  %s1315 = scalar_lea.vmem %s5, 128
  %v1316 = vld [vmem:[%s1315] sm:$0xff]
  %v1317 = vld [vmem:[%s1315 + $0x8] sm:$0xff]
  %v1318 = vld [vmem:[%s1315 + $0x10] sm:$0xff]
  %v1319 = vld [vmem:[%s1315 + $0x18] sm:$0xff]
  %v1320 = vld [vmem:[%s1315 + $0x20] sm:$0xff]
  %v1321 = vld [vmem:[%s1315 + $0x28] sm:$0xff]
  %v1322 = vld [vmem:[%s1315 + $0x30] sm:$0xff]
  %v1323 = vld [vmem:[%s1315 + $0x38] sm:$0xff]
  %v1324 = vld [vmem:[%s1315 + $0x40] sm:$0xff]
  %v1325 = vld [vmem:[%s1315 + $0x48] sm:$0xff]
  %v1326 = vld [vmem:[%s1315 + $0x50] sm:$0xff]
  %v1327 = vld [vmem:[%s1315 + $0x58] sm:$0xff]
  %v1328 = vld [vmem:[%s1315 + $0x60] sm:$0xff]
  %v1329 = vld [vmem:[%s1315 + $0x68] sm:$0xff]
  %v1330 = vld [vmem:[%s1315 + $0x70] sm:$0xff]
  %v1331 = vld [vmem:[%s1315 + $0x78] sm:$0xff]
  %1332 = vmatprep.subr.mxu0 0.0
  %1333 = vmatpush1.msra.mxu0 %v1316
  %1334 = vmatprep.subr.mxu0 0.0
  %1335 = vmatpush1.msra.mxu0 %v1317
  %1336 = vmatprep.subr.mxu0 0.0
  %1337 = vmatpush1.msra.mxu0 %v1318
  %1338 = vmatprep.subr.mxu0 0.0
  %1339 = vmatpush1.msra.mxu0 %v1319
  %1340 = vmatprep.subr.mxu0 0.0
  %1341 = vmatpush1.msra.mxu0 %v1320
  %1342 = vmatprep.subr.mxu0 0.0
  %1343 = vmatpush1.msra.mxu0 %v1321
  %1344 = vmatprep.subr.mxu0 0.0
  %1345 = vmatpush1.msra.mxu0 %v1322
  %1346 = vmatprep.subr.mxu0 0.0
  %1347 = vmatpush1.msra.mxu0 %v1323
  %1348 = vmatprep.subr.mxu0 0.0
  %1349 = vmatpush1.msra.mxu0 %v1324
  %1350 = vmatprep.subr.mxu0 0.0
  %1351 = vmatpush1.msra.mxu0 %v1325
  %1352 = vmatprep.subr.mxu0 0.0
  %1353 = vmatpush1.msra.mxu0 %v1326
  %1354 = vmatprep.subr.mxu0 0.0
  %1355 = vmatpush1.msra.mxu0 %v1327
  %1356 = vmatprep.subr.mxu0 0.0
  %1357 = vmatpush1.msra.mxu0 %v1328
  %1358 = vmatprep.subr.mxu0 0.0
  %1359 = vmatpush1.msra.mxu0 %v1329
  %1360 = vmatprep.subr.mxu0 0.0
  %1361 = vmatpush1.msra.mxu0 %v1330
  %1362 = vmatprep.subr.mxu0 0.0
  %1363 = vmatpush1.msra.mxu0 %v1331
  %1364 = vmatprep.subr.mxu0 0.0
  %1365 = vmatpush1.msra.mxu0 0.0
  %1366 = vmatprep.subr.mxu0 0.0
  %1367 = vmatpush1.msra.mxu0 0.0
  %1368 = vmatprep.subr.mxu0 0.0
  %1369 = vmatpush1.msra.mxu0 0.0
  %1370 = vmatprep.subr.mxu0 0.0
  %1371 = vmatpush1.msra.mxu0 0.0
  %1372 = vmatprep.subr.mxu0 0.0
  %1373 = vmatpush1.msra.mxu0 0.0
  %1374 = vmatprep.subr.mxu0 0.0
  %1375 = vmatpush1.msra.mxu0 0.0
  %1376 = vmatprep.subr.mxu0 0.0
  %1377 = vmatpush1.msra.mxu0 0.0
  %1378 = vmatprep.subr.mxu0 0.0
  %1379 = vmatpush1.msra.mxu0 0.0
  %1380 = vmatprep.subr.mxu0 0.0
  %1381 = vmatpush1.msra.mxu0 0.0
  %1382 = vmatprep.subr.mxu0 0.0
  %1383 = vmatpush1.msra.mxu0 0.0
  %1384 = vmatprep.subr.mxu0 0.0
  %1385 = vmatpush1.msra.mxu0 0.0
  %1386 = vmatprep.subr.mxu0 0.0
  %1387 = vmatpush1.msra.mxu0 0.0
  %1388 = vmatprep.subr.mxu0 0.0
  %1389 = vmatpush1.msra.mxu0 0.0
  %1390 = vmatprep.subr.mxu0 0.0
  %1391 = vmatpush1.msra.mxu0 0.0
  %1392 = vmatprep.subr.mxu0 0.0
  %1393 = vmatpush1.msra.mxu0 0.0
  %1394 = vmatprep.subr.mxu0 0.0
  %1395 = vmatpush1.msra.mxu0 0.0
  %1396 = vmatprep.mubr.f32.mxu0 0.0
  %1397 = vmatmul.mubr.f32.gmra.mrb[0].mxu0 %v1311
  %v1398 = vpop.f32.mrb[0].mxu0
  %v1399 = vadd.f32 0.0, %v1398
  %v1400 = vpop.f32.mrb[0].mxu0
  %1401 = vmatprep.mubr.f32.mxu0 0.0
  %1402 = vmatmul.mubr.f32.gmra.mrb[0].mxu0 %v1312
  %v1403 = vpop.f32.mrb[0].mxu0
  %v1404 = vadd.f32 0.0, %v1403
  %v1405 = vpop.f32.mrb[0].mxu0
  %1406 = vmatprep.mubr.f32.mxu0 0.0
  %1407 = vmatmul.mubr.f32.gmra.mrb[0].mxu0 %v1313
  %v1408 = vpop.f32.mrb[0].mxu0
  %v1409 = vadd.f32 0.0, %v1408
  %v1410 = vpop.f32.mrb[0].mxu0
  %1411 = vmatprep.mubr.f32.mxu0 0.0
  %1412 = vmatmul.mubr.f32.gmra.mrb[0].mxu0 %v1314
  %v1413 = vpop.f32.mrb[0].mxu0
  %v1414 = vadd.f32 0.0, %v1413
  %v1415 = vpop.f32.mrb[0].mxu0
  %1416 = vdwg.mxu0
  %1417 = vmatprep.subr.mxu0 0.0
  %1418 = vmatpush1.msra.mxu0 %v1295
  %1419 = vmatprep.subr.mxu0 0.0
  %1420 = vmatpush1.msra.mxu0 %v1296
  %1421 = vmatprep.subr.mxu0 0.0
  %1422 = vmatpush1.msra.mxu0 %v1297
  %1423 = vmatprep.subr.mxu0 0.0
  %1424 = vmatpush1.msra.mxu0 %v1298
  %1425 = vmatprep.subr.mxu0 0.0
  %1426 = vmatpush1.msra.mxu0 %v1299
  %1427 = vmatprep.subr.mxu0 0.0
  %1428 = vmatpush1.msra.mxu0 %v1300
  %1429 = vmatprep.subr.mxu0 0.0
  %1430 = vmatpush1.msra.mxu0 %v1301
  %1431 = vmatprep.subr.mxu0 0.0
  %1432 = vmatpush1.msra.mxu0 %v1302
  %1433 = vmatprep.subr.mxu0 0.0
  %1434 = vmatpush1.msra.mxu0 %v1303
  %1435 = vmatprep.subr.mxu0 0.0
  %1436 = vmatpush1.msra.mxu0 %v1304
  %1437 = vmatprep.subr.mxu0 0.0
  %1438 = vmatpush1.msra.mxu0 %v1305
  %1439 = vmatprep.subr.mxu0 0.0
  %1440 = vmatpush1.msra.mxu0 %v1306
  %1441 = vmatprep.subr.mxu0 0.0
  %1442 = vmatpush1.msra.mxu0 %v1307
  %1443 = vmatprep.subr.mxu0 0.0
  %1444 = vmatpush1.msra.mxu0 %v1308
  %1445 = vmatprep.subr.mxu0 0.0
  %1446 = vmatpush1.msra.mxu0 %v1309
  %1447 = vmatprep.subr.mxu0 0.0
  %1448 = vmatpush1.msra.mxu0 %v1310
  %1449 = vmatprep.subr.mxu0 0.0
  %1450 = vmatpush1.msra.mxu0 0.0
  %1451 = vmatprep.subr.mxu0 0.0
  %1452 = vmatpush1.msra.mxu0 0.0
  %1453 = vmatprep.subr.mxu0 0.0
  %1454 = vmatpush1.msra.mxu0 0.0
  %1455 = vmatprep.subr.mxu0 0.0
  %1456 = vmatpush1.msra.mxu0 0.0
  %1457 = vmatprep.subr.mxu0 0.0
  %1458 = vmatpush1.msra.mxu0 0.0
  %1459 = vmatprep.subr.mxu0 0.0
  %1460 = vmatpush1.msra.mxu0 0.0
  %1461 = vmatprep.subr.mxu0 0.0
  %1462 = vmatpush1.msra.mxu0 0.0
  %1463 = vmatprep.subr.mxu0 0.0
  %1464 = vmatpush1.msra.mxu0 0.0
  %1465 = vmatprep.subr.mxu0 0.0
  %1466 = vmatpush1.msra.mxu0 0.0
  %1467 = vmatprep.subr.mxu0 0.0
  %1468 = vmatpush1.msra.mxu0 0.0
  %1469 = vmatprep.subr.mxu0 0.0
  %1470 = vmatpush1.msra.mxu0 0.0
  %1471 = vmatprep.subr.mxu0 0.0
  %1472 = vmatpush1.msra.mxu0 0.0
  %1473 = vmatprep.subr.mxu0 0.0
  %1474 = vmatpush1.msra.mxu0 0.0
  %1475 = vmatprep.subr.mxu0 0.0
  %1476 = vmatpush1.msra.mxu0 0.0
  %1477 = vmatprep.subr.mxu0 0.0
  %1478 = vmatpush1.msra.mxu0 0.0
  %1479 = vmatprep.subr.mxu0 0.0
  %1480 = vmatpush1.msra.mxu0 0.0
  %1481 = vmatprep.mubr.f32.mxu0 0.0
  %1482 = vmatmul.mubr.f32.gmra.mrb[0].mxu0 %v1291
  %v1483 = vpop.f32.mrb[0].mxu0
  %v1484 = vadd.f32 %v1399, %v1483
  %v1485 = vpop.f32.mrb[0].mxu0
  %1486 = vmatprep.mubr.f32.mxu0 0.0
  %1487 = vmatmul.mubr.f32.gmra.mrb[0].mxu0 %v1292
  %v1488 = vpop.f32.mrb[0].mxu0
  %v1489 = vadd.f32 %v1404, %v1488
  %v1490 = vpop.f32.mrb[0].mxu0
  %1491 = vmatprep.mubr.f32.mxu0 0.0
  %1492 = vmatmul.mubr.f32.gmra.mrb[0].mxu0 %v1293
  %v1493 = vpop.f32.mrb[0].mxu0
  %v1494 = vadd.f32 %v1409, %v1493
  %v1495 = vpop.f32.mrb[0].mxu0
  %1496 = vmatprep.mubr.f32.mxu0 0.0
  %1497 = vmatmul.mubr.f32.gmra.mrb[0].mxu0 %v1294
  %v1498 = vpop.f32.mrb[0].mxu0
  %v1499 = vadd.f32 %v1414, %v1498
  %v1500 = vpop.f32.mrb[0].mxu0
  %1501 = vdwg.mxu0
  %s1502 = scalar_lea.vmem [#allocation3], 16
  %v1503 = vld [vmem:[%s1502] sm:$0xff]
  %v1504 = vld [vmem:[%s1502 + $0x8] sm:$0xff]
  %v1505 = vld [vmem:[%s1502 + $0x10] sm:$0xff]
  %v1506 = vld [vmem:[%s1502 + $0x18] sm:$0xff]
  %s1507 = scalar_lea.vmem %s5, 256
  %v1508 = vld [vmem:[%s1507] sm:$0xff]
  %v1509 = vld [vmem:[%s1507 + $0x8] sm:$0xff]
  %v1510 = vld [vmem:[%s1507 + $0x10] sm:$0xff]
  %v1511 = vld [vmem:[%s1507 + $0x18] sm:$0xff]
  %v1512 = vld [vmem:[%s1507 + $0x20] sm:$0xff]
  %v1513 = vld [vmem:[%s1507 + $0x28] sm:$0xff]
  %v1514 = vld [vmem:[%s1507 + $0x30] sm:$0xff]
  %v1515 = vld [vmem:[%s1507 + $0x38] sm:$0xff]
  %v1516 = vld [vmem:[%s1507 + $0x40] sm:$0xff]
  %v1517 = vld [vmem:[%s1507 + $0x48] sm:$0xff]
  %v1518 = vld [vmem:[%s1507 + $0x50] sm:$0xff]
  %v1519 = vld [vmem:[%s1507 + $0x58] sm:$0xff]
  %v1520 = vld [vmem:[%s1507 + $0x60] sm:$0xff]
  %v1521 = vld [vmem:[%s1507 + $0x68] sm:$0xff]
  %v1522 = vld [vmem:[%s1507 + $0x70] sm:$0xff]
  %v1523 = vld [vmem:[%s1507 + $0x78] sm:$0xff]
  %1524 = vmatprep.subr.mxu0 0.0
  %1525 = vmatpush1.msra.mxu0 %v1508
  %1526 = vmatprep.subr.mxu0 0.0
  %1527 = vmatpush1.msra.mxu0 %v1509
  %1528 = vmatprep.subr.mxu0 0.0
  %1529 = vmatpush1.msra.mxu0 %v1510
  %1530 = vmatprep.subr.mxu0 0.0
  %1531 = vmatpush1.msra.mxu0 %v1511
  %1532 = vmatprep.subr.mxu0 0.0
  %1533 = vmatpush1.msra.mxu0 %v1512
  %1534 = vmatprep.subr.mxu0 0.0
  %1535 = vmatpush1.msra.mxu0 %v1513
  %1536 = vmatprep.subr.mxu0 0.0
  %1537 = vmatpush1.msra.mxu0 %v1514
  %1538 = vmatprep.subr.mxu0 0.0
  %1539 = vmatpush1.msra.mxu0 %v1515
  %1540 = vmatprep.subr.mxu0 0.0
  %1541 = vmatpush1.msra.mxu0 %v1516
  %1542 = vmatprep.subr.mxu0 0.0
  %1543 = vmatpush1.msra.mxu0 %v1517
  %1544 = vmatprep.subr.mxu0 0.0
  %1545 = vmatpush1.msra.mxu0 %v1518
  %1546 = vmatprep.subr.mxu0 0.0
  %1547 = vmatpush1.msra.mxu0 %v1519
  %1548 = vmatprep.subr.mxu0 0.0
  %1549 = vmatpush1.msra.mxu0 %v1520
  %1550 = vmatprep.subr.mxu0 0.0
  %1551 = vmatpush1.msra.mxu0 %v1521
  %1552 = vmatprep.subr.mxu0 0.0
  %1553 = vmatpush1.msra.mxu0 %v1522
  %1554 = vmatprep.subr.mxu0 0.0
  %1555 = vmatpush1.msra.mxu0 %v1523
  %1556 = vmatprep.subr.mxu0 0.0
  %1557 = vmatpush1.msra.mxu0 0.0
  %1558 = vmatprep.subr.mxu0 0.0
  %1559 = vmatpush1.msra.mxu0 0.0
  %1560 = vmatprep.subr.mxu0 0.0
  %1561 = vmatpush1.msra.mxu0 0.0
  %1562 = vmatprep.subr.mxu0 0.0
  %1563 = vmatpush1.msra.mxu0 0.0
  %1564 = vmatprep.subr.mxu0 0.0
  %1565 = vmatpush1.msra.mxu0 0.0
  %1566 = vmatprep.subr.mxu0 0.0
  %1567 = vmatpush1.msra.mxu0 0.0
  %1568 = vmatprep.subr.mxu0 0.0
  %1569 = vmatpush1.msra.mxu0 0.0
  %1570 = vmatprep.subr.mxu0 0.0
  %1571 = vmatpush1.msra.mxu0 0.0
  %1572 = vmatprep.subr.mxu0 0.0
  %1573 = vmatpush1.msra.mxu0 0.0
  %1574 = vmatprep.subr.mxu0 0.0
  %1575 = vmatpush1.msra.mxu0 0.0
  %1576 = vmatprep.subr.mxu0 0.0
  %1577 = vmatpush1.msra.mxu0 0.0
  %1578 = vmatprep.subr.mxu0 0.0
  %1579 = vmatpush1.msra.mxu0 0.0
  %1580 = vmatprep.subr.mxu0 0.0
  %1581 = vmatpush1.msra.mxu0 0.0
  %1582 = vmatprep.subr.mxu0 0.0
  %1583 = vmatpush1.msra.mxu0 0.0
  %1584 = vmatprep.subr.mxu0 0.0
  %1585 = vmatpush1.msra.mxu0 0.0
  %1586 = vmatprep.subr.mxu0 0.0
  %1587 = vmatpush1.msra.mxu0 0.0
  %1588 = vmatprep.mubr.f32.mxu0 0.0
  %1589 = vmatmul.mubr.f32.gmra.mrb[0].mxu0 %v1503
  %v1590 = vpop.f32.mrb[0].mxu0
  %v1591 = vadd.f32 0.0, %v1590
  %v1592 = vpop.f32.mrb[0].mxu0
  %1593 = vmatprep.mubr.f32.mxu0 0.0
  %1594 = vmatmul.mubr.f32.gmra.mrb[0].mxu0 %v1504
  %v1595 = vpop.f32.mrb[0].mxu0
  %v1596 = vadd.f32 0.0, %v1595
  %v1597 = vpop.f32.mrb[0].mxu0
  %1598 = vmatprep.mubr.f32.mxu0 0.0
  %1599 = vmatmul.mubr.f32.gmra.mrb[0].mxu0 %v1505
  %v1600 = vpop.f32.mrb[0].mxu0
  %v1601 = vadd.f32 0.0, %v1600
  %v1602 = vpop.f32.mrb[0].mxu0
  %1603 = vmatprep.mubr.f32.mxu0 0.0
  %1604 = vmatmul.mubr.f32.gmra.mrb[0].mxu0 %v1506
  %v1605 = vpop.f32.mrb[0].mxu0
  %v1606 = vadd.f32 0.0, %v1605
  %v1607 = vpop.f32.mrb[0].mxu0
  %1608 = vdwg.mxu0
  %v1609 = vadd.f32 %v1484, %v1591
  %v1610 = vadd.f32 %v1489, %v1596
  %v1611 = vadd.f32 %v1494, %v1601
  %v1612 = vadd.f32 %v1499, %v1606
  %1617 = vrot.lane.b32.xlu0 %v1609, 64
  %v1618 = vpop.permute.xlu0 %1617
  %1619 = vrot.lane.b32.xlu0 %v1610, 64
  %v1620 = vpop.permute.xlu0 %1619
  %1621 = vrot.lane.b32.xlu0 %v1611, 64
  %v1622 = vpop.permute.xlu0 %1621
  %1623 = vrot.lane.b32.xlu0 %v1612, 64
  %v1624 = vpop.permute.xlu0 %1623
  %v1629 = vmax.f32 %v1609, %v1618
  %v1630 = vmax.f32 %v1610, %v1620
  %v1631 = vmax.f32 %v1611, %v1622
  %v1632 = vmax.f32 %v1612, %v1624
  %v1633 = vmax.f32 %v1629, %v1630
  %v1634 = vmax.f32 %v1631, %v1632
  %v1635 = vld [vmem:[%s6] sm:$0x1]
  %v1637 = vlaneseq
  %v1638 = vshrl.u32 %v1637, 7
  %v1639 = vsub.s32 0, %v1638
  %v1640 = vrot.slane %v1635, %v1639
  %v1642 = vadd.f32 %v1633, %v1640
  %v1643 = vadd.f32 %v1634, %v1640
  %vm1644 = vcmp.ge.f32.partialorder %v1642, 0.0
  %vm1645 = vcmp.ge.f32.partialorder %v1643, 0.0
  %v1646 = vmul.f32 %v1642, 0.2
  %v1647 = vmul.f32 %v1643, 0.2
  %v1648 = vsel %vm1644, %v1642, %v1646
  %v1649 = vsel %vm1645, %v1643, %v1647
  %v1650 = vld [vmem:[%s7] sm:$0xff]
  %v1651 = vld [vmem:[%s7 + $0x8] sm:$0xff]
  %v1652 = vld [vmem:[%s7 + $0x10] sm:$0xff]
  %v1653 = vld [vmem:[%s7 + $0x18] sm:$0xff]
  %v1654 = vld [vmem:[%s7 + $0x20] sm:$0xff]
  %v1655 = vld [vmem:[%s7 + $0x28] sm:$0xff]
  %v1656 = vld [vmem:[%s7 + $0x30] sm:$0xff]
  %v1657 = vld [vmem:[%s7 + $0x38] sm:$0xff]
  %s1658 = scalar_lea.vmem %s7, 64
  %v1659 = vld [vmem:[%s1658] sm:$0xff]
  %v1660 = vld [vmem:[%s1658 + $0x8] sm:$0xff]
  %v1661 = vld [vmem:[%s1658 + $0x10] sm:$0xff]
  %v1662 = vld [vmem:[%s1658 + $0x18] sm:$0xff]
  %v1663 = vld [vmem:[%s1658 + $0x20] sm:$0xff]
  %v1664 = vld [vmem:[%s1658 + $0x28] sm:$0xff]
  %v1665 = vld [vmem:[%s1658 + $0x30] sm:$0xff]
  %v1666 = vld [vmem:[%s1658 + $0x38] sm:$0xff]
  %vm1667 = vcmask 523264
  %v1669 = vsel %vm1667, %v1649, 0
  %1671 = vmatprep.subr.mxu0 0.0
  %1672 = vmatpush1.msra.mxu0 %v1659
  %1673 = vmatprep.subr.mxu0 0.0
  %1674 = vmatpush1.msra.mxu0 %v1660
  %1675 = vmatprep.subr.mxu0 0.0
  %1676 = vmatpush1.msra.mxu0 %v1661
  %1677 = vmatprep.subr.mxu0 0.0
  %1678 = vmatpush1.msra.mxu0 %v1662
  %1679 = vmatprep.subr.mxu0 0.0
  %1680 = vmatpush1.msra.mxu0 %v1663
  %1681 = vmatprep.subr.mxu0 0.0
  %1682 = vmatpush1.msra.mxu0 %v1664
  %1683 = vmatprep.subr.mxu0 0.0
  %1684 = vmatpush1.msra.mxu0 %v1665
  %1685 = vmatprep.subr.mxu0 0.0
  %1686 = vmatpush1.msra.mxu0 %v1666
  %1687 = vmatprep.subr.mxu0 0.0
  %1688 = vmatpush1.msra.mxu0 0.0
  %1689 = vmatprep.subr.mxu0 0.0
  %1690 = vmatpush1.msra.mxu0 0.0
  %1691 = vmatprep.subr.mxu0 0.0
  %1692 = vmatpush1.msra.mxu0 0.0
  %1693 = vmatprep.subr.mxu0 0.0
  %1694 = vmatpush1.msra.mxu0 0.0
  %1695 = vmatprep.subr.mxu0 0.0
  %1696 = vmatpush1.msra.mxu0 0.0
  %1697 = vmatprep.subr.mxu0 0.0
  %1698 = vmatpush1.msra.mxu0 0.0
  %1699 = vmatprep.subr.mxu0 0.0
  %1700 = vmatpush1.msra.mxu0 0.0
  %1701 = vmatprep.subr.mxu0 0.0
  %1702 = vmatpush1.msra.mxu0 0.0
  %1703 = vmatprep.subr.mxu0 0.0
  %1704 = vmatpush1.msra.mxu0 0.0
  %1705 = vmatprep.subr.mxu0 0.0
  %1706 = vmatpush1.msra.mxu0 0.0
  %1707 = vmatprep.subr.mxu0 0.0
  %1708 = vmatpush1.msra.mxu0 0.0
  %1709 = vmatprep.subr.mxu0 0.0
  %1710 = vmatpush1.msra.mxu0 0.0
  %1711 = vmatprep.subr.mxu0 0.0
  %1712 = vmatpush1.msra.mxu0 0.0
  %1713 = vmatprep.subr.mxu0 0.0
  %1714 = vmatpush1.msra.mxu0 0.0
  %1715 = vmatprep.subr.mxu0 0.0
  %1716 = vmatpush1.msra.mxu0 0.0
  %1717 = vmatprep.subr.mxu0 0.0
  %1718 = vmatpush1.msra.mxu0 0.0
  %1719 = vmatprep.subr.mxu0 0.0
  %1720 = vmatpush1.msra.mxu0 0.0
  %1721 = vmatprep.subr.mxu0 0.0
  %1722 = vmatpush1.msra.mxu0 0.0
  %1723 = vmatprep.subr.mxu0 0.0
  %1724 = vmatpush1.msra.mxu0 0.0
  %1725 = vmatprep.subr.mxu0 0.0
  %1726 = vmatpush1.msra.mxu0 0.0
  %1727 = vmatprep.subr.mxu0 0.0
  %1728 = vmatpush1.msra.mxu0 0.0
  %1729 = vmatprep.subr.mxu0 0.0
  %1730 = vmatpush1.msra.mxu0 0.0
  %1731 = vmatprep.subr.mxu0 0.0
  %1732 = vmatpush1.msra.mxu0 0.0
  %1733 = vmatprep.subr.mxu0 0.0
  %1734 = vmatpush1.msra.mxu0 0.0
  %1735 = vmatprep.mubr.f32.mxu0 0.0
  %1736 = vmatmul.mubr.f32.gmra.mrb[0].mxu0 %v1669
  %v1737 = vpop.f32.mrb[0].mxu0
  %v1738 = vadd.f32 0.0, %v1737
  %v1739 = vpop.f32.mrb[0].mxu0
  %1740 = vdwg.mxu0
  %v1742 = vsel %vm1667, %v1648, 0
  %1744 = vmatprep.subr.mxu0 0.0
  %1745 = vmatpush1.msra.mxu0 %v1650
  %1746 = vmatprep.subr.mxu0 0.0
  %1747 = vmatpush1.msra.mxu0 %v1651
  %1748 = vmatprep.subr.mxu0 0.0
  %1749 = vmatpush1.msra.mxu0 %v1652
  %1750 = vmatprep.subr.mxu0 0.0
  %1751 = vmatpush1.msra.mxu0 %v1653
  %1752 = vmatprep.subr.mxu0 0.0
  %1753 = vmatpush1.msra.mxu0 %v1654
  %1754 = vmatprep.subr.mxu0 0.0
  %1755 = vmatpush1.msra.mxu0 %v1655
  %1756 = vmatprep.subr.mxu0 0.0
  %1757 = vmatpush1.msra.mxu0 %v1656
  %1758 = vmatprep.subr.mxu0 0.0
  %1759 = vmatpush1.msra.mxu0 %v1657
  %1760 = vmatprep.subr.mxu0 0.0
  %1761 = vmatpush1.msra.mxu0 0.0
  %1762 = vmatprep.subr.mxu0 0.0
  %1763 = vmatpush1.msra.mxu0 0.0
  %1764 = vmatprep.subr.mxu0 0.0
  %1765 = vmatpush1.msra.mxu0 0.0
  %1766 = vmatprep.subr.mxu0 0.0
  %1767 = vmatpush1.msra.mxu0 0.0
  %1768 = vmatprep.subr.mxu0 0.0
  %1769 = vmatpush1.msra.mxu0 0.0
  %1770 = vmatprep.subr.mxu0 0.0
  %1771 = vmatpush1.msra.mxu0 0.0
  %1772 = vmatprep.subr.mxu0 0.0
  %1773 = vmatpush1.msra.mxu0 0.0
  %1774 = vmatprep.subr.mxu0 0.0
  %1775 = vmatpush1.msra.mxu0 0.0
  %1776 = vmatprep.subr.mxu0 0.0
  %1777 = vmatpush1.msra.mxu0 0.0
  %1778 = vmatprep.subr.mxu0 0.0
  %1779 = vmatpush1.msra.mxu0 0.0
  %1780 = vmatprep.subr.mxu0 0.0
  %1781 = vmatpush1.msra.mxu0 0.0
  %1782 = vmatprep.subr.mxu0 0.0
  %1783 = vmatpush1.msra.mxu0 0.0
  %1784 = vmatprep.subr.mxu0 0.0
  %1785 = vmatpush1.msra.mxu0 0.0
  %1786 = vmatprep.subr.mxu0 0.0
  %1787 = vmatpush1.msra.mxu0 0.0
  %1788 = vmatprep.subr.mxu0 0.0
  %1789 = vmatpush1.msra.mxu0 0.0
  %1790 = vmatprep.subr.mxu0 0.0
  %1791 = vmatpush1.msra.mxu0 0.0
  %1792 = vmatprep.subr.mxu0 0.0
  %1793 = vmatpush1.msra.mxu0 0.0
  %1794 = vmatprep.subr.mxu0 0.0
  %1795 = vmatpush1.msra.mxu0 0.0
  %1796 = vmatprep.subr.mxu0 0.0
  %1797 = vmatpush1.msra.mxu0 0.0
  %1798 = vmatprep.subr.mxu0 0.0
  %1799 = vmatpush1.msra.mxu0 0.0
  %1800 = vmatprep.subr.mxu0 0.0
  %1801 = vmatpush1.msra.mxu0 0.0
  %1802 = vmatprep.subr.mxu0 0.0
  %1803 = vmatpush1.msra.mxu0 0.0
  %1804 = vmatprep.subr.mxu0 0.0
  %1805 = vmatpush1.msra.mxu0 0.0
  %1806 = vmatprep.subr.mxu0 0.0
  %1807 = vmatpush1.msra.mxu0 0.0
  %1808 = vmatprep.mubr.f32.mxu0 0.0
  %1809 = vmatmul.mubr.f32.gmra.mrb[0].mxu0 %v1742
  %v1810 = vpop.f32.mrb[0].mxu0
  %v1811 = vadd.f32 %v1738, %v1810
  %v1812 = vpop.f32.mrb[0].mxu0
  %1813 = vdwg.mxu0
  %v1814 = vld [vmem:[%s8] sm:$0x1]
  %v1816 = vlaneseq
  %v1817 = vshrl.u32 %v1816, 7
  %v1818 = vsub.s32 0, %v1817
  %v1819 = vrot.slane %v1814, %v1818
  %v1821 = vadd.f32 %v1811, %v1819
  %vm1822 = vcmask 80896
  %1823 = vst.msk [vmem:[%s9] sm:$0xff] %vm1822, %v1821
  // Predicated region
  $region38: #{ta_forward.1} parent=0 // pred_check
    _
  $region39: #{ta_forward.1} parent=0 // pred_check_branch
    %1825 = sbr.rel (0) target = $region41
  $region40: #{ta_forward.1} parent=0 // pred_region
    _
  $region41: #{ta_forward.1} parent=0 // pred_fallthru
    _
  // Predicated region
  $region42: #{ta_forward.1} parent=0 // pred_check
    _
  $region43: #{ta_forward.1} parent=0 // pred_check_branch
    %1827 = sbr.rel (0) target = $region45
  $region44: #{ta_forward.1} parent=0 // pred_region
    _
  $region45: #{ta_forward.1} parent=0 // pred_fallthru
    _

</llo_original>
